<compile_context>
chip_gen: v7x
topology: tpu7x:2x2x1
jax: 0.10.0
libtpu: 0.0.40
codegen_flags: <defaults>
</compile_context>

<pallas_src>
import jax
import jax.numpy as jnp
from jax.experimental import pallas as pl
from jax.experimental.pallas import tpu as pltpu

SELU_ALPHA = 1.6732632423543772
SELU_SCALE = 1.0507009873554805

_SUBLANE = 8  # f32 sublane count


def _selu(x):
    # SELU(x) = scale * (x if x > 0 else alpha * (exp(x) - 1))
    # Clamp the exp argument so the discarded branch never produces inf.
    neg = SELU_ALPHA * (jnp.exp(jnp.minimum(x, 0.0)) - 1.0)
    return SELU_SCALE * jnp.where(x > 0, x, neg)


def generator_kernel(x_ref, w1_ref, b1_ref, w2_ref, b2_ref, w3_ref, b3_ref, o_ref):
    """One batch-tile per grid step: 3x (MXU matmul -> f32 bias + SELU)."""
    wdt = w1_ref.dtype                      # operand dtype (f32 or bf16)
    x = x_ref[...].astype(wdt)              # in-kernel cast (no wrapper pass)

    h = jnp.dot(x, w1_ref[...], preferred_element_type=jnp.float32) + b1_ref[...]
    h = _selu(h)                            # f32 epilogue (v5e-safe)

    h = jnp.dot(h.astype(wdt), w2_ref[...],
                preferred_element_type=jnp.float32) + b2_ref[...]
    h = _selu(h)

    h = jnp.dot(h.astype(wdt), w3_ref[...],
                preferred_element_type=jnp.float32) + b3_ref[...]
    o_ref[...] = _selu(h).astype(o_ref.dtype)


def _round_up(n, m):
    return ((n + m - 1) // m) * m


def prepare_params(params, compute_dtype=jnp.float32):
    """One-time weight/bias preparation. Call ONCE and cache the result;
    generator_forward takes the prepared dict (no per-call HBM passes)."""
    return {
        "w1": jnp.asarray(params["w1"], compute_dtype),
        "w2": jnp.asarray(params["w2"], compute_dtype),
        "w3": jnp.asarray(params["w3"], compute_dtype),
        # biases stay f32 for the epilogue; stored 2-D for TPU-friendly layout
        "b1": jnp.asarray(params["b1"], jnp.float32).reshape(1, -1),
        "b2": jnp.asarray(params["b2"], jnp.float32).reshape(1, -1),
        "b3": jnp.asarray(params["b3"], jnp.float32).reshape(1, -1),
    }


def generator_forward(x, prepared, *, tile_b=None):
    """x: (B, input_size) f32. `prepared`: output of prepare_params."""
    B, in_dim = x.shape
    hid = prepared["w1"].shape[1]
    out_dim = prepared["w3"].shape[1]
    out_dtype = x.dtype

    # ---- batch tile: large (amortize ~0.35us/step), but keep >= ~4 grid
    #      steps when B allows so v7x gets >= 2 steps per TensorCore.
    if tile_b is None:
        tile_b = min(4096, _round_up(pl.cdiv(B, 4), _SUBLANE))
    tile_b = max(_SUBLANE, _round_up(min(tile_b, _round_up(B, _SUBLANE)), _SUBLANE))
    grid = (pl.cdiv(B, tile_b),)            # uneven last block handled by Pallas

    # ---- VMEM budget (lean, unpadded blocks), capped at 48 MiB for v7x headroom
    cdt = jnp.dtype(prepared["w1"].dtype).itemsize
    bytes_w = (in_dim * hid + hid * hid + hid * out_dim) * cdt \
        + (2 * hid + out_dim) * 4
    bytes_io = tile_b * (in_dim + out_dim) * 4     # one x tile + one out tile (f32)
    bytes_act = 4 * tile_b * hid * 4               # f32 activation temporaries
    vmem_limit = int(min(max(2 * (2 * bytes_io + 2 * bytes_w + bytes_act),
                             16 << 20), 48 << 20))

    # ---- advisory cost estimate for the XLA scheduler
    flops = 2 * B * (in_dim * hid + hid * hid + hid * out_dim)
    transcendentals = B * (2 * hid + out_dim)      # exp inside SELU
    bytes_accessed = int(B * in_dim * 4 + bytes_w + B * out_dim * 4)
    cost = pl.CostEstimate(flops=flops, transcendentals=transcendentals,
                           bytes_accessed=bytes_accessed)

    return pl.pallas_call(
        generator_kernel,
        out_shape=jax.ShapeDtypeStruct((B, out_dim), out_dtype),
        grid=grid,
        in_specs=[
            pl.BlockSpec((tile_b, in_dim), lambda i: (i, 0)),   # x tile (unpadded)
            pl.BlockSpec((in_dim, hid), lambda i: (0, 0)),      # w1 (resident)
            pl.BlockSpec((1, hid), lambda i: (0, 0)),           # b1
            pl.BlockSpec((hid, hid), lambda i: (0, 0)),         # w2
            pl.BlockSpec((1, hid), lambda i: (0, 0)),           # b2
            pl.BlockSpec((hid, out_dim), lambda i: (0, 0)),     # w3
            pl.BlockSpec((1, out_dim), lambda i: (0, 0)),       # b3
        ],
        out_specs=pl.BlockSpec((tile_b, out_dim), lambda i: (i, 0)),
        compiler_params=pltpu.CompilerParams(
            dimension_semantics=("parallel",),
            vmem_limit_bytes=vmem_limit,
        ),
        cost_estimate=cost,
    )(x, prepared["w1"], prepared["b1"], prepared["w2"], prepared["b2"],
      prepared["w3"], prepared["b3"])


def init_params(key, input_size, hidden_size, output_size, dtype=jnp.float32):
    """Synthetic init mirroring nn.Linear (weights stored transposed: (in, out))."""
    ks = jax.random.split(key, 6)

    def _linear(kw, kb, fan_in, fan_out):
        bound = 1.0 / jnp.sqrt(fan_in)
        w = jax.random.uniform(kw, (fan_in, fan_out), dtype, -bound, bound)
        b = jax.random.uniform(kb, (1, fan_out), dtype, -bound, bound)
        return w, b

    w1, b1 = _linear(ks[0], ks[1], input_size, hidden_size)
    w2, b2 = _linear(ks[2], ks[3], hidden_size, hidden_size)
    w3, b3 = _linear(ks[4], ks[5], hidden_size, output_size)
    return {"w1": w1, "b1": b1, "w2": w2, "b2": b2, "w3": w3, "b3": b3}


def _reference(x, p):
    def selu(v):
        return SELU_SCALE * jnp.where(v > 0, v, SELU_ALPHA * (jnp.exp(v) - 1.0))
    h = selu(x @ p["w1"] + p["b1"])
    h = selu(h @ p["w2"] + p["b2"])
    return selu(h @ p["w3"] + p["b3"])


if __name__ == "__main__":
    key = jax.random.PRNGKey(0)
    k_x, k_p = jax.random.split(key)

    # Batch not a multiple of the tile exercises the partial-last-block path.
    batch, input_size, hidden_size, output_size = 500, 16, 32, 16
    x = jax.random.normal(k_x, (batch, input_size), jnp.float32)
    params = init_params(k_p, input_size, hidden_size, output_size)

    ref = _reference(x, params)

    # Prepare (cast) weights ONCE, outside the forward.
    prepared = prepare_params(params, compute_dtype=jnp.float32)

    # 1) Default auto-tile (tile_b = 128 here -> grid of 4, partial last block).
    out = jax.block_until_ready(generator_forward(x, prepared))
    assert out.shape == (batch, output_size)
    assert jnp.allclose(out, ref, atol=1e-5, rtol=1e-5), (
        "max abs err", float(jnp.max(jnp.abs(out - ref))))

    # 2) Explicit larger tile (single-ish grid step) -- same numerics.
    out2 = jax.block_until_ready(generator_forward(x, prepared, tile_b=512))
    assert out2.shape == (batch, output_size)
    assert jnp.allclose(out2, ref, atol=1e-5, rtol=1e-5), (
        "max abs err", float(jnp.max(jnp.abs(out2 - ref))))

    print("KERNEL_OK")
</pallas_src>

<mosaic_0001>
module attributes {stable_mosaic.version = 11 : i64} {
  func.func @generator_kernel(%arg0: i32, %arg1: memref<128x16xf32, #tpu.memory_space<vmem>>, %arg2: memref<16x32xf32, #tpu.memory_space<vmem>>, %arg3: memref<1x32xf32, #tpu.memory_space<vmem>>, %arg4: memref<32x32xf32, #tpu.memory_space<vmem>>, %arg5: memref<1x32xf32, #tpu.memory_space<vmem>>, %arg6: memref<32x16xf32, #tpu.memory_space<vmem>>, %arg7: memref<1x16xf32, #tpu.memory_space<vmem>>, %arg8: memref<128x16xf32, #tpu.memory_space<vmem>>) attributes {dimension_semantics = [#tpu.dimension_semantics<parallel>], iteration_bounds = array<i64: 4>, scalar_prefetch = 0 : i64, scratch_operands = 0 : i64, tpu.core_type = #tpu.core_type<tc>, window_params = [{transform_indices = @transform_0, window_bounds = array<i64: 128, 16>}, {pipeline_mode = #tpu.pipeline_mode<synchronous>, transform_indices = @transform_1, window_bounds = array<i64: 16, 32>}, {pipeline_mode = #tpu.pipeline_mode<synchronous>, transform_indices = @transform_2, window_bounds = array<i64: 1, 32>}, {pipeline_mode = #tpu.pipeline_mode<synchronous>, transform_indices = @transform_3, window_bounds = array<i64: 32, 32>}, {pipeline_mode = #tpu.pipeline_mode<synchronous>, transform_indices = @transform_4, window_bounds = array<i64: 1, 32>}, {pipeline_mode = #tpu.pipeline_mode<synchronous>, transform_indices = @transform_5, window_bounds = array<i64: 32, 16>}, {pipeline_mode = #tpu.pipeline_mode<synchronous>, transform_indices = @transform_6, window_bounds = array<i64: 1, 16>}, {transform_indices = @transform_7, window_bounds = array<i64: 128, 16>}]} {
    %c0 = arith.constant 0 : index
    %c0_0 = arith.constant 0 : index
    %0 = vector.load %arg1[%c0, %c0_0] : memref<128x16xf32, #tpu.memory_space<vmem>>, vector<128x16xf32>
    %c0_1 = arith.constant 0 : index
    %c0_2 = arith.constant 0 : index
    %1 = vector.load %arg2[%c0_1, %c0_2] : memref<16x32xf32, #tpu.memory_space<vmem>>, vector<16x32xf32>
    %cst = arith.constant dense<0.000000e+00> : vector<128x32xf32>
    %2 = tpu.matmul %0, %1, %cst {dimension_numbers = #tpu.dot_dimension_numbers<[1], [0], [0], [1], [0, 0, 1, 1], [], []>} : vector<128x16xf32>, vector<16x32xf32>, vector<128x32xf32> -> vector<128x32xf32>
    %c0_3 = arith.constant 0 : index
    %c0_4 = arith.constant 0 : index
    %3 = vector.load %arg3[%c0_3, %c0_4] : memref<1x32xf32, #tpu.memory_space<vmem>>, vector<1x32xf32>
    %4 = vector.broadcast %3 : vector<1x32xf32> to vector<128x32xf32>
    %5 = arith.addf %2, %4 : vector<128x32xf32>
    %cst_5 = arith.constant 0.000000e+00 : f32
    %6 = vector.broadcast %cst_5 : f32 to vector<128x32xf32>
    %7 = arith.minimumf %5, %6 : vector<128x32xf32>
    %8 = math.exp %7 : vector<128x32xf32>
    %cst_6 = arith.constant 1.000000e+00 : f32
    %9 = vector.broadcast %cst_6 : f32 to vector<128x32xf32>
    %10 = arith.subf %8, %9 : vector<128x32xf32>
    %cst_7 = arith.constant 1.67326319 : f32
    %11 = vector.broadcast %cst_7 : f32 to vector<128x32xf32>
    %12 = arith.mulf %11, %10 : vector<128x32xf32>
    %cst_8 = arith.constant 0.000000e+00 : f32
    %13 = vector.broadcast %cst_8 : f32 to vector<128x32xf32>
    %14 = arith.cmpf ogt, %5, %13 : vector<128x32xf32>
    %15 = arith.select %14, %5, %12 : vector<128x32xi1>, vector<128x32xf32>
    %cst_9 = arith.constant 1.05070102 : f32
    %16 = vector.broadcast %cst_9 : f32 to vector<128x32xf32>
    %17 = arith.mulf %16, %15 : vector<128x32xf32>
    %c0_10 = arith.constant 0 : index
    %c0_11 = arith.constant 0 : index
    %18 = vector.load %arg4[%c0_10, %c0_11] : memref<32x32xf32, #tpu.memory_space<vmem>>, vector<32x32xf32>
    %cst_12 = arith.constant dense<0.000000e+00> : vector<128x32xf32>
    %19 = tpu.matmul %17, %18, %cst_12 {dimension_numbers = #tpu.dot_dimension_numbers<[1], [0], [0], [1], [0, 0, 1, 1], [], []>} : vector<128x32xf32>, vector<32x32xf32>, vector<128x32xf32> -> vector<128x32xf32>
    %c0_13 = arith.constant 0 : index
    %c0_14 = arith.constant 0 : index
    %20 = vector.load %arg5[%c0_13, %c0_14] : memref<1x32xf32, #tpu.memory_space<vmem>>, vector<1x32xf32>
    %21 = vector.broadcast %20 : vector<1x32xf32> to vector<128x32xf32>
    %22 = arith.addf %19, %21 : vector<128x32xf32>
    %cst_15 = arith.constant 0.000000e+00 : f32
    %23 = vector.broadcast %cst_15 : f32 to vector<128x32xf32>
    %24 = arith.minimumf %22, %23 : vector<128x32xf32>
    %25 = math.exp %24 : vector<128x32xf32>
    %cst_16 = arith.constant 1.000000e+00 : f32
    %26 = vector.broadcast %cst_16 : f32 to vector<128x32xf32>
    %27 = arith.subf %25, %26 : vector<128x32xf32>
    %cst_17 = arith.constant 1.67326319 : f32
    %28 = vector.broadcast %cst_17 : f32 to vector<128x32xf32>
    %29 = arith.mulf %28, %27 : vector<128x32xf32>
    %cst_18 = arith.constant 0.000000e+00 : f32
    %30 = vector.broadcast %cst_18 : f32 to vector<128x32xf32>
    %31 = arith.cmpf ogt, %22, %30 : vector<128x32xf32>
    %32 = arith.select %31, %22, %29 : vector<128x32xi1>, vector<128x32xf32>
    %cst_19 = arith.constant 1.05070102 : f32
    %33 = vector.broadcast %cst_19 : f32 to vector<128x32xf32>
    %34 = arith.mulf %33, %32 : vector<128x32xf32>
    %c0_20 = arith.constant 0 : index
    %c0_21 = arith.constant 0 : index
    %35 = vector.load %arg6[%c0_20, %c0_21] : memref<32x16xf32, #tpu.memory_space<vmem>>, vector<32x16xf32>
    %cst_22 = arith.constant dense<0.000000e+00> : vector<128x16xf32>
    %36 = tpu.matmul %34, %35, %cst_22 {dimension_numbers = #tpu.dot_dimension_numbers<[1], [0], [0], [1], [0, 0, 1, 1], [], []>} : vector<128x32xf32>, vector<32x16xf32>, vector<128x16xf32> -> vector<128x16xf32>
    %c0_23 = arith.constant 0 : index
    %c0_24 = arith.constant 0 : index
    %37 = vector.load %arg7[%c0_23, %c0_24] : memref<1x16xf32, #tpu.memory_space<vmem>>, vector<1x16xf32>
    %38 = vector.broadcast %37 : vector<1x16xf32> to vector<128x16xf32>
    %39 = arith.addf %36, %38 : vector<128x16xf32>
    %cst_25 = arith.constant 0.000000e+00 : f32
    %40 = vector.broadcast %cst_25 : f32 to vector<128x16xf32>
    %41 = arith.minimumf %39, %40 : vector<128x16xf32>
    %42 = math.exp %41 : vector<128x16xf32>
    %cst_26 = arith.constant 1.000000e+00 : f32
    %43 = vector.broadcast %cst_26 : f32 to vector<128x16xf32>
    %44 = arith.subf %42, %43 : vector<128x16xf32>
    %cst_27 = arith.constant 1.67326319 : f32
    %45 = vector.broadcast %cst_27 : f32 to vector<128x16xf32>
    %46 = arith.mulf %45, %44 : vector<128x16xf32>
    %cst_28 = arith.constant 0.000000e+00 : f32
    %47 = vector.broadcast %cst_28 : f32 to vector<128x16xf32>
    %48 = arith.cmpf ogt, %39, %47 : vector<128x16xf32>
    %49 = arith.select %48, %39, %46 : vector<128x16xi1>, vector<128x16xf32>
    %cst_29 = arith.constant 1.05070102 : f32
    %50 = vector.broadcast %cst_29 : f32 to vector<128x16xf32>
    %51 = arith.mulf %50, %49 : vector<128x16xf32>
    %c0_30 = arith.constant 0 : index
    %c0_31 = arith.constant 0 : index
    %52 = vector.load %arg8[%c0_30, %c0_31] : memref<128x16xf32, #tpu.memory_space<vmem>>, vector<128x16xf32>
    tpu.vector_store %arg8[%c0_30, %c0_31], %51 {strides = array<i32>} : memref<128x16xf32, #tpu.memory_space<vmem>>, vector<128x16xf32>,
    return
  }
  func.func @transform_0(%arg0: i32) -> (i32, i32) {
    %c0_i32 = arith.constant 0 : i32
    %c0_i32_0 = arith.constant 0 : i32
    return %arg0, %c0_i32 : i32, i32
  }
  func.func @transform_1(%arg0: i32) -> (i32, i32) {
    %c0_i32 = arith.constant 0 : i32
    %c0_i32_0 = arith.constant 0 : i32
    %c0_i32_1 = arith.constant 0 : i32
    return %c0_i32, %c0_i32_0 : i32, i32
  }
  func.func @transform_2(%arg0: i32) -> (i32, i32) {
    %c0_i32 = arith.constant 0 : i32
    %c0_i32_0 = arith.constant 0 : i32
    %c0_i32_1 = arith.constant 0 : i32
    return %c0_i32, %c0_i32_0 : i32, i32
  }
  func.func @transform_3(%arg0: i32) -> (i32, i32) {
    %c0_i32 = arith.constant 0 : i32
    %c0_i32_0 = arith.constant 0 : i32
    %c0_i32_1 = arith.constant 0 : i32
    return %c0_i32, %c0_i32_0 : i32, i32
  }
  func.func @transform_4(%arg0: i32) -> (i32, i32) {
    %c0_i32 = arith.constant 0 : i32
    %c0_i32_0 = arith.constant 0 : i32
    %c0_i32_1 = arith.constant 0 : i32
    return %c0_i32, %c0_i32_0 : i32, i32
  }
  func.func @transform_5(%arg0: i32) -> (i32, i32) {
    %c0_i32 = arith.constant 0 : i32
    %c0_i32_0 = arith.constant 0 : i32
    %c0_i32_1 = arith.constant 0 : i32
    return %c0_i32, %c0_i32_0 : i32, i32
  }
  func.func @transform_6(%arg0: i32) -> (i32, i32) {
    %c0_i32 = arith.constant 0 : i32
    %c0_i32_0 = arith.constant 0 : i32
    %c0_i32_1 = arith.constant 0 : i32
    return %c0_i32, %c0_i32_0 : i32, i32
  }
  func.func @transform_7(%arg0: i32) -> (i32, i32) {
    %c0_i32 = arith.constant 0 : i32
    %c0_i32_0 = arith.constant 0 : i32
    return %arg0, %c0_i32 : i32, i32
  }
}

</mosaic_0001>

<llo_original>
// kernel: tpu_custom_call.1
$region0: #{tpu_custom_call.1}
  #allocation0 [shape = 'u32[]', space=smem, size = 0x4, offset = 0x4, fixed_abs, tag = 'smem constant byte address 0x4 - core index']
  #allocation1 [shape = 'u32[144,128]{1,0:T(1,128)}', space=vmem, size = 0x12000, scoped, tag = 'internal scratch']
  %s0 = inlined_call_operand.vmem [shape: f32[500,16], index: 0, kind: input, shape index: {}]
  %s1 = inlined_call_operand.vmem [shape: f32[16,32], index: 1, kind: input, shape index: {}]
  %s2 = inlined_call_operand.vmem [shape: f32[1,32], index: 2, kind: input, shape index: {}]
  %s3 = inlined_call_operand.vmem [shape: f32[32,32], index: 3, kind: input, shape index: {}]
  %s4 = inlined_call_operand.vmem [shape: f32[1,32], index: 4, kind: input, shape index: {}]
  %s5 = inlined_call_operand.vmem [shape: f32[32,16], index: 5, kind: input, shape index: {}]
  %s6 = inlined_call_operand.vmem [shape: f32[1,16], index: 6, kind: input, shape index: {}]
  %s7 = inlined_call_operand.vmem [shape: f32[500,16], index: 7, kind: output, shape index: {}]
  %s8 = sld [smem:[#allocation0]]
  $region109: #{tpu_custom_call.1} parent=0
    _
  %s10 = ssub.s32 1, %s8
  %s11 = scalar_select 0, %s10, %s8
  $region1: #{tpu_custom_call.1} parent=0
    #allocation2 [shape = 'u8[131072]{0}', space=vmem, size = 0x20000, scoped, tag = 'output window, operand 0']
    loop: start=0, step=1, limit=6
    $region2: #{tpu_custom_call.1} parent=1 // loop_pre_header
      _
    $region3: #{tpu_custom_call.1} parent=1 // loop_header
      %s13 = sphi 0, %s17
      %p14 = scmp.ge.s32.totalorder %s13, 6
      %s23 = sphi 0, %s25
      %s26 = sphi 0, %s23
      %s27 = sphi 0, %s26
      %s43 = sphi 0, %s27
      %s47 = sphi 0, %s47
      %s49 = sphi 0, %s47
      %s50 = sphi 0, %s49
      %s64 = sphi 0, %s50
      %s68 = sphi 0, %s68
      %s70 = sphi 0, %s68
      %s71 = sphi 0, %s70
      %s85 = sphi 0, %s71
      %s89 = sphi 0, %s89
      %s91 = sphi 0, %s89
      %s92 = sphi 0, %s91
      %s106 = sphi 0, %s92
      %s110 = sphi 0, %s110
      %s112 = sphi 0, %s110
      %s113 = sphi 0, %s112
      %s127 = sphi 0, %s113
      %s131 = sphi 0, %s131
      %s133 = sphi 0, %s131
      %s134 = sphi 0, %s133
      %s148 = sphi 0, %s134
      %s152 = sphi 0, %s152
      %s154 = sphi 0, %s152
      %s155 = sphi 0, %s154
      %s169 = sphi 0, %s155
      %s175 = sphi 0, %s177
      %s178 = sphi 0, %s175
      %s179 = sphi 0, %s178
      %s195 = sphi 0, %s179
    $region4: #{tpu_custom_call.1} parent=1 // loop_header_branch
      %16 = sbr.rel (%p14) target = $region8
    $region5: #{tpu_custom_call.1} parent=1 // loop_body
      %s18 = ssub.s32 %s13, 1
      %s19 = ssub.s32 %s13, 2
      %s20 = sadd.s32 %s13, 1
      %s21 = ssub.s32 %s13, %s20
      %p22 = scmp.eq.s32.totalorder %s21, 0
      %s24 = sadd.s32 %s23, 1
      %s25 = scalar_select %p22, %s23, %s24
      %p28 = pneg %p22
      %p29 = scmp.eq.s32.totalorder %s13, 3
      %p30 = por %p28, %p29
      %p31 = scmp.ne.s32.totalorder %s23, %s26
      %p32 = scmp.eq.s32.totalorder %s13, 0
      %p33 = por %p31, %p32
      %p34 = scmp.ne.s32.totalorder %s23, %s26
      %p35 = scmp.eq.s32.totalorder %s18, 3
      %p36 = por %p34, %p35
      %p37 = scmp.ne.s32.totalorder %s26, %s27
      %p38 = scmp.eq.s32.totalorder %s18, 0
      %p39 = por %p37, %p38
      %p40 = scmp.ne.s32.totalorder %s26, %s27
      %p41 = scmp.eq.s32.totalorder %s19, 3
      %p42 = por %p40, %p41
      %p44 = scmp.ne.s32.totalorder %s27, %s43
      %p45 = scmp.eq.s32.totalorder %s19, 0
      %p46 = por %p44, %p45
      %s48 = sadd.s32 %s47, 1
      %p51 = scmp.eq.s32.totalorder %s13, 3
      %p52 = scmp.ne.s32.totalorder %s47, %s49
      %p53 = scmp.eq.s32.totalorder %s13, 0
      %p54 = por %p52, %p53
      %p55 = scmp.ne.s32.totalorder %s47, %s49
      %p56 = scmp.eq.s32.totalorder %s18, 3
      %p57 = por %p55, %p56
      %p58 = scmp.ne.s32.totalorder %s49, %s50
      %p59 = scmp.eq.s32.totalorder %s18, 0
      %p60 = por %p58, %p59
      %p61 = scmp.ne.s32.totalorder %s49, %s50
      %p62 = scmp.eq.s32.totalorder %s19, 3
      %p63 = por %p61, %p62
      %p65 = scmp.ne.s32.totalorder %s50, %s64
      %p66 = scmp.eq.s32.totalorder %s19, 0
      %p67 = por %p65, %p66
      %s69 = sadd.s32 %s68, 1
      %p72 = scmp.eq.s32.totalorder %s13, 3
      %p73 = scmp.ne.s32.totalorder %s68, %s70
      %p74 = scmp.eq.s32.totalorder %s13, 0
      %p75 = por %p73, %p74
      %p76 = scmp.ne.s32.totalorder %s68, %s70
      %p77 = scmp.eq.s32.totalorder %s18, 3
      %p78 = por %p76, %p77
      %p79 = scmp.ne.s32.totalorder %s70, %s71
      %p80 = scmp.eq.s32.totalorder %s18, 0
      %p81 = por %p79, %p80
      %p82 = scmp.ne.s32.totalorder %s70, %s71
      %p83 = scmp.eq.s32.totalorder %s19, 3
      %p84 = por %p82, %p83
      %p86 = scmp.ne.s32.totalorder %s71, %s85
      %p87 = scmp.eq.s32.totalorder %s19, 0
      %p88 = por %p86, %p87
      %s90 = sadd.s32 %s89, 1
      %p93 = scmp.eq.s32.totalorder %s13, 3
      %p94 = scmp.ne.s32.totalorder %s89, %s91
      %p95 = scmp.eq.s32.totalorder %s13, 0
      %p96 = por %p94, %p95
      %p97 = scmp.ne.s32.totalorder %s89, %s91
      %p98 = scmp.eq.s32.totalorder %s18, 3
      %p99 = por %p97, %p98
      %p100 = scmp.ne.s32.totalorder %s91, %s92
      %p101 = scmp.eq.s32.totalorder %s18, 0
      %p102 = por %p100, %p101
      %p103 = scmp.ne.s32.totalorder %s91, %s92
      %p104 = scmp.eq.s32.totalorder %s19, 3
      %p105 = por %p103, %p104
      %p107 = scmp.ne.s32.totalorder %s92, %s106
      %p108 = scmp.eq.s32.totalorder %s19, 0
      %p109 = por %p107, %p108
      %s111 = sadd.s32 %s110, 1
      %p114 = scmp.eq.s32.totalorder %s13, 3
      %p115 = scmp.ne.s32.totalorder %s110, %s112
      %p116 = scmp.eq.s32.totalorder %s13, 0
      %p117 = por %p115, %p116
      %p118 = scmp.ne.s32.totalorder %s110, %s112
      %p119 = scmp.eq.s32.totalorder %s18, 3
      %p120 = por %p118, %p119
      %p121 = scmp.ne.s32.totalorder %s112, %s113
      %p122 = scmp.eq.s32.totalorder %s18, 0
      %p123 = por %p121, %p122
      %p124 = scmp.ne.s32.totalorder %s112, %s113
      %p125 = scmp.eq.s32.totalorder %s19, 3
      %p126 = por %p124, %p125
      %p128 = scmp.ne.s32.totalorder %s113, %s127
      %p129 = scmp.eq.s32.totalorder %s19, 0
      %p130 = por %p128, %p129
      %s132 = sadd.s32 %s131, 1
      %p135 = scmp.eq.s32.totalorder %s13, 3
      %p136 = scmp.ne.s32.totalorder %s131, %s133
      %p137 = scmp.eq.s32.totalorder %s13, 0
      %p138 = por %p136, %p137
      %p139 = scmp.ne.s32.totalorder %s131, %s133
      %p140 = scmp.eq.s32.totalorder %s18, 3
      %p141 = por %p139, %p140
      %p142 = scmp.ne.s32.totalorder %s133, %s134
      %p143 = scmp.eq.s32.totalorder %s18, 0
      %p144 = por %p142, %p143
      %p145 = scmp.ne.s32.totalorder %s133, %s134
      %p146 = scmp.eq.s32.totalorder %s19, 3
      %p147 = por %p145, %p146
      %p149 = scmp.ne.s32.totalorder %s134, %s148
      %p150 = scmp.eq.s32.totalorder %s19, 0
      %p151 = por %p149, %p150
      %s153 = sadd.s32 %s152, 1
      %p156 = scmp.eq.s32.totalorder %s13, 3
      %p157 = scmp.ne.s32.totalorder %s152, %s154
      %p158 = scmp.eq.s32.totalorder %s13, 0
      %p159 = por %p157, %p158
      %p160 = scmp.ne.s32.totalorder %s152, %s154
      %p161 = scmp.eq.s32.totalorder %s18, 3
      %p162 = por %p160, %p161
      %p163 = scmp.ne.s32.totalorder %s154, %s155
      %p164 = scmp.eq.s32.totalorder %s18, 0
      %p165 = por %p163, %p164
      %p166 = scmp.ne.s32.totalorder %s154, %s155
      %p167 = scmp.eq.s32.totalorder %s19, 3
      %p168 = por %p166, %p167
      %p170 = scmp.ne.s32.totalorder %s155, %s169
      %p171 = scmp.eq.s32.totalorder %s19, 0
      %p172 = por %p170, %p171
      %s173 = ssub.s32 %s13, %s20
      %p174 = scmp.eq.s32.totalorder %s173, 0
      %s176 = sadd.s32 %s175, 1
      %s177 = scalar_select %p174, %s175, %s176
      %p180 = pneg %p174
      %p181 = scmp.eq.s32.totalorder %s13, 3
      %p182 = por %p180, %p181
      %p183 = scmp.ne.s32.totalorder %s175, %s178
      %p184 = scmp.eq.s32.totalorder %s13, 0
      %p185 = por %p183, %p184
      %p186 = scmp.ne.s32.totalorder %s175, %s178
      %p187 = scmp.eq.s32.totalorder %s18, 3
      %p188 = por %p186, %p187
      %p189 = scmp.ne.s32.totalorder %s178, %s179
      %p190 = scmp.eq.s32.totalorder %s18, 0
      %p191 = por %p189, %p190
      %p192 = scmp.ne.s32.totalorder %s178, %s179
      %p193 = scmp.eq.s32.totalorder %s19, 3
      %p194 = por %p192, %p193
      %p196 = scmp.ne.s32.totalorder %s179, %s195
      %p197 = scmp.eq.s32.totalorder %s19, 0
      %p198 = por %p196, %p197
      %p199 = scmp.le.s32.totalorder 1, %s13
      %p200 = scmp.lt.s32.totalorder %s13, 5
      %p201 = pnand %p199, %p200
      %p202 = pneg %p201
      // Predicated region
      $region9: #{tpu_custom_call.1} parent=5 // pred_check
        _
      $region10: #{tpu_custom_call.1} parent=5 // pred_check_branch
        %204 = sbr.rel (%p201) target = $region12
      $region11: #{tpu_custom_call.1} parent=5 // pred_region
        %s205 = ssub.s32 %s13, 1
        // Predicated region
        $region13: #{tpu_custom_call.1} parent=11 // pred_check
          %p206 = pneg %p60
        $region14: #{tpu_custom_call.1} parent=11 // pred_check_branch
          %208 = sbr.rel (%p206) target = $region16
        $region15: #{tpu_custom_call.1} parent=11 // pred_region
          _
        $region16: #{tpu_custom_call.1} parent=11 // pred_fallthru
          _
        // Predicated region
        $region17: #{tpu_custom_call.1} parent=11 // pred_check
          %p209 = pneg %p81
        $region18: #{tpu_custom_call.1} parent=11 // pred_check_branch
          %211 = sbr.rel (%p209) target = $region20
        $region19: #{tpu_custom_call.1} parent=11 // pred_region
          _
        $region20: #{tpu_custom_call.1} parent=11 // pred_fallthru
          _
        // Predicated region
        $region21: #{tpu_custom_call.1} parent=11 // pred_check
          %p212 = pneg %p102
        $region22: #{tpu_custom_call.1} parent=11 // pred_check_branch
          %214 = sbr.rel (%p212) target = $region24
        $region23: #{tpu_custom_call.1} parent=11 // pred_region
          _
        $region24: #{tpu_custom_call.1} parent=11 // pred_fallthru
          _
        // Predicated region
        $region25: #{tpu_custom_call.1} parent=11 // pred_check
          %p215 = pneg %p123
        $region26: #{tpu_custom_call.1} parent=11 // pred_check_branch
          %217 = sbr.rel (%p215) target = $region28
        $region27: #{tpu_custom_call.1} parent=11 // pred_region
          _
        $region28: #{tpu_custom_call.1} parent=11 // pred_fallthru
          _
        // Predicated region
        $region29: #{tpu_custom_call.1} parent=11 // pred_check
          %p218 = pneg %p144
        $region30: #{tpu_custom_call.1} parent=11 // pred_check_branch
          %220 = sbr.rel (%p218) target = $region32
        $region31: #{tpu_custom_call.1} parent=11 // pred_region
          _
        $region32: #{tpu_custom_call.1} parent=11 // pred_fallthru
          _
        // Predicated region
        $region33: #{tpu_custom_call.1} parent=11 // pred_check
          %p221 = pneg %p165
        $region34: #{tpu_custom_call.1} parent=11 // pred_check_branch
          %223 = sbr.rel (%p221) target = $region36
        $region35: #{tpu_custom_call.1} parent=11 // pred_region
          _
        $region36: #{tpu_custom_call.1} parent=11 // pred_fallthru
          _
      $region12: #{tpu_custom_call.1} parent=5 // pred_fallthru
        _
      %p224 = scmp.lt.s32.totalorder %s13, 4
      // Predicated region
      $region37: #{tpu_custom_call.1} parent=5 // pred_check
        %p225 = pneg %p224
      $region38: #{tpu_custom_call.1} parent=5 // pred_check_branch
        %227 = sbr.rel (%p225) target = $region40
      $region39: #{tpu_custom_call.1} parent=5 // pred_region
        // Predicated region
        $region41: #{tpu_custom_call.1} parent=39 // pred_check
          %p228 = pneg %p33
        $region42: #{tpu_custom_call.1} parent=39 // pred_check_branch
          %230 = sbr.rel (%p228) target = $region44
        $region43: #{tpu_custom_call.1} parent=39 // pred_region
          %s231 = smul.u32 16, %s13
          %s232 = ssub.s32 63, %s231
          %p233 = scmp.lt.s32.totalorder %s232, 16
          %s234 = scalar_select %p233, %s232, 16
          %s235 = smul.u32 128, %s234
          %p236 = scmp.lt.s32.totalorder %s231, 62
          %s237 = scalar_select %p236, %s231, 62
          %s238 = smul.addr %s237, 8
          %s239 = scalar_lea.vmem %s0, %s238
          %s240 = smul.u32 16, %s13
          %s241 = ssub.s32 63, %s240
          %p242 = scmp.lt.s32.totalorder %s241, 16
          %s243 = scalar_select %p242, %s241, 16
          %s244 = smul.u32 128, %s243
        $region44: #{tpu_custom_call.1} parent=39 // pred_fallthru
          _
      $region40: #{tpu_custom_call.1} parent=5 // pred_fallthru
        _
      %p245 = scmp.le.s32.totalorder 1, %s13
      %p246 = scmp.lt.s32.totalorder %s13, 5
      %p247 = pnand %p245, %p246
      %p248 = pneg %p247
      // Predicated region
      $region45: #{tpu_custom_call.1} parent=5 // pred_check
        _
      $region46: #{tpu_custom_call.1} parent=5 // pred_check_branch
        %250 = sbr.rel (%p247) target = $region48
      $region47: #{tpu_custom_call.1} parent=5 // pred_region
        %s251 = ssub.s32 %s13, 1
        %s252 = smul.u32 16, %s18
        %s253 = ssub.s32 63, %s252
        %p254 = scmp.lt.s32.totalorder %s253, 16
        %s255 = scalar_select %p254, %s253, 16
        %s256 = smul.u32 128, %s255
        %p257 = scmp.lt.s32.totalorder %s252, 62
        %s258 = scalar_select %p257, %s252, 62
        %s259 = smul.addr %s258, 8
        %s260 = scalar_lea.vmem %s0, %s259
        %p261 = pneg %p39
        %p262 = pneg %p36
        %p263 = pneg %p60
        %p264 = pneg %p57
        %p265 = pneg %p81
        %p266 = pneg %p78
        %p267 = pneg %p102
        %p268 = pneg %p99
        %p269 = pneg %p123
        %p270 = pneg %p120
        %p271 = pneg %p144
        %p272 = pneg %p141
        %p273 = pneg %p165
        %p274 = pneg %p162
        %p275 = pneg %p191
        %p276 = pneg %p188
        %s277 = sand.u32 %s178, 1
        %s278 = sand.u32 %s178, 1
        %s279 = smul.addr %s278, 128
        %s280 = scalar_lea.vmem [#allocation2], %s279
        %s281 = smul.u32 16, %s18
        %s282 = ssub.s32 63, %s281
        %p283 = scmp.lt.s32.totalorder %s282, 16
        %s284 = scalar_select %p283, %s282, 16
        %s285 = smul.u32 128, %s284
        %p286 = scmp.lt.s32.totalorder %s281, 62
        %s287 = scalar_select %p286, %s281, 62
        %s288 = smul.addr %s287, 8
        %s289 = scalar_lea.vmem %s0, %s288
        %s290 = smul.u32 16, %s18
        %s291 = ssub.s32 63, %s290
        %p292 = scmp.lt.s32.totalorder %s291, 16
        %s293 = scalar_select %p292, %s291, 16
        %s294 = smul.u32 128, %s293
        %s295 = smul.u32 16, %s18
        %s296 = ssub.s32 63, %s295
        %p297 = scmp.lt.s32.totalorder %s296, 16
        %s298 = scalar_select %p297, %s296, 16
        %s299 = smul.u32 128, %s298
        %v300 = vld [vmem:[%s289] sm:$0xff]
        %v301 = vld [vmem:[%s289 + $0x8] sm:$0xff]
        %v302 = vld [vmem:[%s289 + $0x10] sm:$0xff]
        %v303 = vld [vmem:[%s289 + $0x18] sm:$0xff]
        %v304 = vld [vmem:[%s289 + $0x20] sm:$0xff]
        %v305 = vld [vmem:[%s289 + $0x28] sm:$0xff]
        %v306 = vld [vmem:[%s289 + $0x30] sm:$0xff]
        %v307 = vld [vmem:[%s289 + $0x38] sm:$0xff]
        %v308 = vld [vmem:[%s289 + $0x40] sm:$0xff]
        %v309 = vld [vmem:[%s289 + $0x48] sm:$0xff]
        %v310 = vld [vmem:[%s289 + $0x50] sm:$0xff]
        %v311 = vld [vmem:[%s289 + $0x58] sm:$0xff]
        %v312 = vld [vmem:[%s289 + $0x60] sm:$0xff]
        %v313 = vld [vmem:[%s289 + $0x68] sm:$0xff]
        %v314 = vld [vmem:[%s289 + $0x70] sm:$0xff]
        %v315 = vld [vmem:[%s289 + $0x78] sm:$0xff]
        %v316 = vld [vmem:[%s1] sm:$0xff]
        %v317 = vld [vmem:[%s1 + $0x8] sm:$0xff]
        %v318 = vld [vmem:[%s2] sm:$0x1]
        %v320 = vlaneseq
        %v321 = vshrl.u32 %v320, 7
        %v322 = vsub.s32 0, %v321
        %v323 = vrot.slane %v318, %v322
        %vm325 = vcmask 130048
        %v327 = vsel %vm325, %v300, 0
        %v330 = vsel %vm325, %v301, 0
        %v333 = vsel %vm325, %v302, 0
        %v336 = vsel %vm325, %v303, 0
        %v339 = vsel %vm325, %v304, 0
        %v342 = vsel %vm325, %v305, 0
        %v345 = vsel %vm325, %v306, 0
        %v348 = vsel %vm325, %v307, 0
        %v351 = vsel %vm325, %v308, 0
        %v354 = vsel %vm325, %v309, 0
        %v357 = vsel %vm325, %v310, 0
        %v360 = vsel %vm325, %v311, 0
        %v363 = vsel %vm325, %v312, 0
        %v366 = vsel %vm325, %v313, 0
        %v369 = vsel %vm325, %v314, 0
        %v372 = vsel %vm325, %v315, 0
        %374 = vmatprep.subr.mxu0 0.0
        %375 = vmatpush1.msra.mxu0 %v316
        %376 = vmatprep.subr.mxu0 0.0
        %377 = vmatpush1.msra.mxu0 %v317
        %378 = vmatprep.subr.mxu0 0.0
        %379 = vmatpush1.msra.mxu0 0.0
        %380 = vmatprep.subr.mxu0 0.0
        %381 = vmatpush1.msra.mxu0 0.0
        %382 = vmatprep.subr.mxu0 0.0
        %383 = vmatpush1.msra.mxu0 0.0
        %384 = vmatprep.subr.mxu0 0.0
        %385 = vmatpush1.msra.mxu0 0.0
        %386 = vmatprep.subr.mxu0 0.0
        %387 = vmatpush1.msra.mxu0 0.0
        %388 = vmatprep.subr.mxu0 0.0
        %389 = vmatpush1.msra.mxu0 0.0
        %390 = vmatprep.subr.mxu0 0.0
        %391 = vmatpush1.msra.mxu0 0.0
        %392 = vmatprep.subr.mxu0 0.0
        %393 = vmatpush1.msra.mxu0 0.0
        %394 = vmatprep.subr.mxu0 0.0
        %395 = vmatpush1.msra.mxu0 0.0
        %396 = vmatprep.subr.mxu0 0.0
        %397 = vmatpush1.msra.mxu0 0.0
        %398 = vmatprep.subr.mxu0 0.0
        %399 = vmatpush1.msra.mxu0 0.0
        %400 = vmatprep.subr.mxu0 0.0
        %401 = vmatpush1.msra.mxu0 0.0
        %402 = vmatprep.subr.mxu0 0.0
        %403 = vmatpush1.msra.mxu0 0.0
        %404 = vmatprep.subr.mxu0 0.0
        %405 = vmatpush1.msra.mxu0 0.0
        %406 = vmatprep.subr.mxu0 0.0
        %407 = vmatpush1.msra.mxu0 0.0
        %408 = vmatprep.subr.mxu0 0.0
        %409 = vmatpush1.msra.mxu0 0.0
        %410 = vmatprep.subr.mxu0 0.0
        %411 = vmatpush1.msra.mxu0 0.0
        %412 = vmatprep.subr.mxu0 0.0
        %413 = vmatpush1.msra.mxu0 0.0
        %414 = vmatprep.subr.mxu0 0.0
        %415 = vmatpush1.msra.mxu0 0.0
        %416 = vmatprep.subr.mxu0 0.0
        %417 = vmatpush1.msra.mxu0 0.0
        %418 = vmatprep.subr.mxu0 0.0
        %419 = vmatpush1.msra.mxu0 0.0
        %420 = vmatprep.subr.mxu0 0.0
        %421 = vmatpush1.msra.mxu0 0.0
        %422 = vmatprep.subr.mxu0 0.0
        %423 = vmatpush1.msra.mxu0 0.0
        %424 = vmatprep.subr.mxu0 0.0
        %425 = vmatpush1.msra.mxu0 0.0
        %426 = vmatprep.subr.mxu0 0.0
        %427 = vmatpush1.msra.mxu0 0.0
        %428 = vmatprep.subr.mxu0 0.0
        %429 = vmatpush1.msra.mxu0 0.0
        %430 = vmatprep.subr.mxu0 0.0
        %431 = vmatpush1.msra.mxu0 0.0
        %432 = vmatprep.subr.mxu0 0.0
        %433 = vmatpush1.msra.mxu0 0.0
        %434 = vmatprep.subr.mxu0 0.0
        %435 = vmatpush1.msra.mxu0 0.0
        %436 = vmatprep.subr.mxu0 0.0
        %437 = vmatpush1.msra.mxu0 0.0
        %438 = vmatprep.mubr.f32.mxu0 0.0
        %439 = vmatmul.mubr.f32.gmra.mrb[0].mxu0 %v327
        %v440 = vpop.f32.mrb[0].mxu0
        %v441 = vadd.f32 %v323, %v440
        %v442 = vpop.f32.mrb[0].mxu0
        %443 = vmatprep.mubr.f32.mxu0 0.0
        %444 = vmatmul.mubr.f32.gmra.mrb[0].mxu0 %v330
        %v445 = vpop.f32.mrb[0].mxu0
        %v446 = vadd.f32 %v323, %v445
        %v447 = vpop.f32.mrb[0].mxu0
        %448 = vmatprep.mubr.f32.mxu0 0.0
        %449 = vmatmul.mubr.f32.gmra.mrb[0].mxu0 %v333
        %v450 = vpop.f32.mrb[0].mxu0
        %v451 = vadd.f32 %v323, %v450
        %v452 = vpop.f32.mrb[0].mxu0
        %453 = vmatprep.mubr.f32.mxu0 0.0
        %454 = vmatmul.mubr.f32.gmra.mrb[0].mxu0 %v336
        %v455 = vpop.f32.mrb[0].mxu0
        %v456 = vadd.f32 %v323, %v455
        %v457 = vpop.f32.mrb[0].mxu0
        %458 = vmatprep.mubr.f32.mxu0 0.0
        %459 = vmatmul.mubr.f32.gmra.mrb[0].mxu0 %v339
        %v460 = vpop.f32.mrb[0].mxu0
        %v461 = vadd.f32 %v323, %v460
        %v462 = vpop.f32.mrb[0].mxu0
        %463 = vmatprep.mubr.f32.mxu0 0.0
        %464 = vmatmul.mubr.f32.gmra.mrb[0].mxu0 %v342
        %v465 = vpop.f32.mrb[0].mxu0
        %v466 = vadd.f32 %v323, %v465
        %v467 = vpop.f32.mrb[0].mxu0
        %468 = vmatprep.mubr.f32.mxu0 0.0
        %469 = vmatmul.mubr.f32.gmra.mrb[0].mxu0 %v345
        %v470 = vpop.f32.mrb[0].mxu0
        %v471 = vadd.f32 %v323, %v470
        %v472 = vpop.f32.mrb[0].mxu0
        %473 = vmatprep.mubr.f32.mxu0 0.0
        %474 = vmatmul.mubr.f32.gmra.mrb[0].mxu0 %v348
        %v475 = vpop.f32.mrb[0].mxu0
        %v476 = vadd.f32 %v323, %v475
        %v477 = vpop.f32.mrb[0].mxu0
        %478 = vmatprep.mubr.f32.mxu0 0.0
        %479 = vmatmul.mubr.f32.gmra.mrb[0].mxu0 %v351
        %v480 = vpop.f32.mrb[0].mxu0
        %v481 = vadd.f32 %v323, %v480
        %v482 = vpop.f32.mrb[0].mxu0
        %483 = vmatprep.mubr.f32.mxu0 0.0
        %484 = vmatmul.mubr.f32.gmra.mrb[0].mxu0 %v354
        %v485 = vpop.f32.mrb[0].mxu0
        %v486 = vadd.f32 %v323, %v485
        %v487 = vpop.f32.mrb[0].mxu0
        %488 = vmatprep.mubr.f32.mxu0 0.0
        %489 = vmatmul.mubr.f32.gmra.mrb[0].mxu0 %v357
        %v490 = vpop.f32.mrb[0].mxu0
        %v491 = vadd.f32 %v323, %v490
        %v492 = vpop.f32.mrb[0].mxu0
        %493 = vmatprep.mubr.f32.mxu0 0.0
        %494 = vmatmul.mubr.f32.gmra.mrb[0].mxu0 %v360
        %v495 = vpop.f32.mrb[0].mxu0
        %v496 = vadd.f32 %v323, %v495
        %v497 = vpop.f32.mrb[0].mxu0
        %498 = vmatprep.mubr.f32.mxu0 0.0
        %499 = vmatmul.mubr.f32.gmra.mrb[0].mxu0 %v363
        %v500 = vpop.f32.mrb[0].mxu0
        %v501 = vadd.f32 %v323, %v500
        %v502 = vpop.f32.mrb[0].mxu0
        %503 = vmatprep.mubr.f32.mxu0 0.0
        %504 = vmatmul.mubr.f32.gmra.mrb[0].mxu0 %v366
        %v505 = vpop.f32.mrb[0].mxu0
        %v506 = vadd.f32 %v323, %v505
        %v507 = vpop.f32.mrb[0].mxu0
        %508 = vmatprep.mubr.f32.mxu0 0.0
        %509 = vmatmul.mubr.f32.gmra.mrb[0].mxu0 %v369
        %v510 = vpop.f32.mrb[0].mxu0
        %v511 = vadd.f32 %v323, %v510
        %v512 = vpop.f32.mrb[0].mxu0
        %513 = vmatprep.mubr.f32.mxu0 0.0
        %514 = vmatmul.mubr.f32.gmra.mrb[0].mxu0 %v372
        %v515 = vpop.f32.mrb[0].mxu0
        %v516 = vadd.f32 %v323, %v515
        %v517 = vpop.f32.mrb[0].mxu0
        %518 = vdwg.mxu0
        %v519 = vmin.f32 %v441, 0.0
        %v520 = vmin.f32 %v446, 0.0
        %v521 = vmin.f32 %v451, 0.0
        %v522 = vmin.f32 %v456, 0.0
        %v523 = vmin.f32 %v461, 0.0
        %v524 = vmin.f32 %v466, 0.0
        %v525 = vmin.f32 %v471, 0.0
        %v526 = vmin.f32 %v476, 0.0
        %v527 = vmin.f32 %v481, 0.0
        %v528 = vmin.f32 %v486, 0.0
        %v529 = vmin.f32 %v491, 0.0
        %v530 = vmin.f32 %v496, 0.0
        %v531 = vmin.f32 %v501, 0.0
        %v532 = vmin.f32 %v506, 0.0
        %v533 = vmin.f32 %v511, 0.0
        %v534 = vmin.f32 %v516, 0.0
        %v535 = vmul.f32 %v519, 1.442695
        %v536 = vpow.pop %v535
        %v537 = vmul.f32 %v520, 1.442695
        %v538 = vpow.pop %v537
        %v539 = vmul.f32 %v521, 1.442695
        %v540 = vpow.pop %v539
        %v541 = vmul.f32 %v522, 1.442695
        %v542 = vpow.pop %v541
        %v543 = vmul.f32 %v523, 1.442695
        %v544 = vpow.pop %v543
        %v545 = vmul.f32 %v524, 1.442695
        %v546 = vpow.pop %v545
        %v547 = vmul.f32 %v525, 1.442695
        %v548 = vpow.pop %v547
        %v549 = vmul.f32 %v526, 1.442695
        %v550 = vpow.pop %v549
        %v551 = vmul.f32 %v527, 1.442695
        %v552 = vpow.pop %v551
        %v553 = vmul.f32 %v528, 1.442695
        %v554 = vpow.pop %v553
        %v555 = vmul.f32 %v529, 1.442695
        %v556 = vpow.pop %v555
        %v557 = vmul.f32 %v530, 1.442695
        %v558 = vpow.pop %v557
        %v559 = vmul.f32 %v531, 1.442695
        %v560 = vpow.pop %v559
        %v561 = vmul.f32 %v532, 1.442695
        %v562 = vpow.pop %v561
        %v563 = vmul.f32 %v533, 1.442695
        %v564 = vpow.pop %v563
        %v565 = vmul.f32 %v534, 1.442695
        %v566 = vpow.pop %v565
        %v567 = vsub.f32 %v536, 1.0
        %v568 = vsub.f32 %v538, 1.0
        %v569 = vsub.f32 %v540, 1.0
        %v570 = vsub.f32 %v542, 1.0
        %v571 = vsub.f32 %v544, 1.0
        %v572 = vsub.f32 %v546, 1.0
        %v573 = vsub.f32 %v548, 1.0
        %v574 = vsub.f32 %v550, 1.0
        %v575 = vsub.f32 %v552, 1.0
        %v576 = vsub.f32 %v554, 1.0
        %v577 = vsub.f32 %v556, 1.0
        %v578 = vsub.f32 %v558, 1.0
        %v579 = vsub.f32 %v560, 1.0
        %v580 = vsub.f32 %v562, 1.0
        %v581 = vsub.f32 %v564, 1.0
        %v582 = vsub.f32 %v566, 1.0
        %v583 = vmul.f32 %v567, 1.6732632
        %v584 = vmul.f32 %v568, 1.6732632
        %v585 = vmul.f32 %v569, 1.6732632
        %v586 = vmul.f32 %v570, 1.6732632
        %v587 = vmul.f32 %v571, 1.6732632
        %v588 = vmul.f32 %v572, 1.6732632
        %v589 = vmul.f32 %v573, 1.6732632
        %v590 = vmul.f32 %v574, 1.6732632
        %v591 = vmul.f32 %v575, 1.6732632
        %v592 = vmul.f32 %v576, 1.6732632
        %v593 = vmul.f32 %v577, 1.6732632
        %v594 = vmul.f32 %v578, 1.6732632
        %v595 = vmul.f32 %v579, 1.6732632
        %v596 = vmul.f32 %v580, 1.6732632
        %v597 = vmul.f32 %v581, 1.6732632
        %v598 = vmul.f32 %v582, 1.6732632
        %vm599 = vcmp.gt.f32.partialorder %v441, 0.0
        %vm600 = vcmp.gt.f32.partialorder %v446, 0.0
        %vm601 = vcmp.gt.f32.partialorder %v451, 0.0
        %vm602 = vcmp.gt.f32.partialorder %v456, 0.0
        %vm603 = vcmp.gt.f32.partialorder %v461, 0.0
        %vm604 = vcmp.gt.f32.partialorder %v466, 0.0
        %vm605 = vcmp.gt.f32.partialorder %v471, 0.0
        %vm606 = vcmp.gt.f32.partialorder %v476, 0.0
        %vm607 = vcmp.gt.f32.partialorder %v481, 0.0
        %vm608 = vcmp.gt.f32.partialorder %v486, 0.0
        %vm609 = vcmp.gt.f32.partialorder %v491, 0.0
        %vm610 = vcmp.gt.f32.partialorder %v496, 0.0
        %vm611 = vcmp.gt.f32.partialorder %v501, 0.0
        %vm612 = vcmp.gt.f32.partialorder %v506, 0.0
        %vm613 = vcmp.gt.f32.partialorder %v511, 0.0
        %vm614 = vcmp.gt.f32.partialorder %v516, 0.0
        %v615 = vsel %vm599, %v441, %v583
        %v616 = vsel %vm600, %v446, %v584
        %v617 = vsel %vm601, %v451, %v585
        %v618 = vsel %vm602, %v456, %v586
        %v619 = vsel %vm603, %v461, %v587
        %v620 = vsel %vm604, %v466, %v588
        %v621 = vsel %vm605, %v471, %v589
        %v622 = vsel %vm606, %v476, %v590
        %v623 = vsel %vm607, %v481, %v591
        %v624 = vsel %vm608, %v486, %v592
        %v625 = vsel %vm609, %v491, %v593
        %v626 = vsel %vm610, %v496, %v594
        %v627 = vsel %vm611, %v501, %v595
        %v628 = vsel %vm612, %v506, %v596
        %v629 = vsel %vm613, %v511, %v597
        %v630 = vsel %vm614, %v516, %v598
        %v631 = vmul.f32 %v615, 1.050701
        %v632 = vmul.f32 %v616, 1.050701
        %v633 = vmul.f32 %v617, 1.050701
        %v634 = vmul.f32 %v618, 1.050701
        %v635 = vmul.f32 %v619, 1.050701
        %v636 = vmul.f32 %v620, 1.050701
        %v637 = vmul.f32 %v621, 1.050701
        %v638 = vmul.f32 %v622, 1.050701
        %v639 = vmul.f32 %v623, 1.050701
        %v640 = vmul.f32 %v624, 1.050701
        %v641 = vmul.f32 %v625, 1.050701
        %v642 = vmul.f32 %v626, 1.050701
        %v643 = vmul.f32 %v627, 1.050701
        %v644 = vmul.f32 %v628, 1.050701
        %v645 = vmul.f32 %v629, 1.050701
        %v646 = vmul.f32 %v630, 1.050701
        %v647 = vld [vmem:[%s3] sm:$0xff]
        %v648 = vld [vmem:[%s3 + $0x8] sm:$0xff]
        %v649 = vld [vmem:[%s3 + $0x10] sm:$0xff]
        %v650 = vld [vmem:[%s3 + $0x18] sm:$0xff]
        %v651 = vld [vmem:[%s4] sm:$0x1]
        %v653 = vlaneseq
        %v654 = vshrl.u32 %v653, 7
        %v655 = vsub.s32 0, %v654
        %v656 = vrot.slane %v651, %v655
        %vm658 = vcmask 261120
        %v660 = vsel %vm658, %v631, 0
        %v663 = vsel %vm658, %v632, 0
        %v666 = vsel %vm658, %v633, 0
        %v669 = vsel %vm658, %v634, 0
        %v672 = vsel %vm658, %v635, 0
        %v675 = vsel %vm658, %v636, 0
        %v678 = vsel %vm658, %v637, 0
        %v681 = vsel %vm658, %v638, 0
        %v684 = vsel %vm658, %v639, 0
        %v687 = vsel %vm658, %v640, 0
        %v690 = vsel %vm658, %v641, 0
        %v693 = vsel %vm658, %v642, 0
        %v696 = vsel %vm658, %v643, 0
        %v699 = vsel %vm658, %v644, 0
        %v702 = vsel %vm658, %v645, 0
        %v705 = vsel %vm658, %v646, 0
        %707 = vmatprep.subr.mxu0 0.0
        %708 = vmatpush1.msra.mxu0 %v647
        %709 = vmatprep.subr.mxu0 0.0
        %710 = vmatpush1.msra.mxu0 %v648
        %711 = vmatprep.subr.mxu0 0.0
        %712 = vmatpush1.msra.mxu0 %v649
        %713 = vmatprep.subr.mxu0 0.0
        %714 = vmatpush1.msra.mxu0 %v650
        %715 = vmatprep.subr.mxu0 0.0
        %716 = vmatpush1.msra.mxu0 0.0
        %717 = vmatprep.subr.mxu0 0.0
        %718 = vmatpush1.msra.mxu0 0.0
        %719 = vmatprep.subr.mxu0 0.0
        %720 = vmatpush1.msra.mxu0 0.0
        %721 = vmatprep.subr.mxu0 0.0
        %722 = vmatpush1.msra.mxu0 0.0
        %723 = vmatprep.subr.mxu0 0.0
        %724 = vmatpush1.msra.mxu0 0.0
        %725 = vmatprep.subr.mxu0 0.0
        %726 = vmatpush1.msra.mxu0 0.0
        %727 = vmatprep.subr.mxu0 0.0
        %728 = vmatpush1.msra.mxu0 0.0
        %729 = vmatprep.subr.mxu0 0.0
        %730 = vmatpush1.msra.mxu0 0.0
        %731 = vmatprep.subr.mxu0 0.0
        %732 = vmatpush1.msra.mxu0 0.0
        %733 = vmatprep.subr.mxu0 0.0
        %734 = vmatpush1.msra.mxu0 0.0
        %735 = vmatprep.subr.mxu0 0.0
        %736 = vmatpush1.msra.mxu0 0.0
        %737 = vmatprep.subr.mxu0 0.0
        %738 = vmatpush1.msra.mxu0 0.0
        %739 = vmatprep.subr.mxu0 0.0
        %740 = vmatpush1.msra.mxu0 0.0
        %741 = vmatprep.subr.mxu0 0.0
        %742 = vmatpush1.msra.mxu0 0.0
        %743 = vmatprep.subr.mxu0 0.0
        %744 = vmatpush1.msra.mxu0 0.0
        %745 = vmatprep.subr.mxu0 0.0
        %746 = vmatpush1.msra.mxu0 0.0
        %747 = vmatprep.subr.mxu0 0.0
        %748 = vmatpush1.msra.mxu0 0.0
        %749 = vmatprep.subr.mxu0 0.0
        %750 = vmatpush1.msra.mxu0 0.0
        %751 = vmatprep.subr.mxu0 0.0
        %752 = vmatpush1.msra.mxu0 0.0
        %753 = vmatprep.subr.mxu0 0.0
        %754 = vmatpush1.msra.mxu0 0.0
        %755 = vmatprep.subr.mxu0 0.0
        %756 = vmatpush1.msra.mxu0 0.0
        %757 = vmatprep.subr.mxu0 0.0
        %758 = vmatpush1.msra.mxu0 0.0
        %759 = vmatprep.subr.mxu0 0.0
        %760 = vmatpush1.msra.mxu0 0.0
        %761 = vmatprep.subr.mxu0 0.0
        %762 = vmatpush1.msra.mxu0 0.0
        %763 = vmatprep.subr.mxu0 0.0
        %764 = vmatpush1.msra.mxu0 0.0
        %765 = vmatprep.subr.mxu0 0.0
        %766 = vmatpush1.msra.mxu0 0.0
        %767 = vmatprep.subr.mxu0 0.0
        %768 = vmatpush1.msra.mxu0 0.0
        %769 = vmatprep.subr.mxu0 0.0
        %770 = vmatpush1.msra.mxu0 0.0
        %771 = vmatprep.mubr.f32.mxu0 0.0
        %772 = vmatmul.mubr.f32.gmra.mrb[0].mxu0 %v660
        %v773 = vpop.f32.mrb[0].mxu0
        %v774 = vadd.f32 %v656, %v773
        %v775 = vpop.f32.mrb[0].mxu0
        %776 = vmatprep.mubr.f32.mxu0 0.0
        %777 = vmatmul.mubr.f32.gmra.mrb[0].mxu0 %v663
        %v778 = vpop.f32.mrb[0].mxu0
        %v779 = vadd.f32 %v656, %v778
        %v780 = vpop.f32.mrb[0].mxu0
        %781 = vmatprep.mubr.f32.mxu0 0.0
        %782 = vmatmul.mubr.f32.gmra.mrb[0].mxu0 %v666
        %v783 = vpop.f32.mrb[0].mxu0
        %v784 = vadd.f32 %v656, %v783
        %v785 = vpop.f32.mrb[0].mxu0
        %786 = vmatprep.mubr.f32.mxu0 0.0
        %787 = vmatmul.mubr.f32.gmra.mrb[0].mxu0 %v669
        %v788 = vpop.f32.mrb[0].mxu0
        %v789 = vadd.f32 %v656, %v788
        %v790 = vpop.f32.mrb[0].mxu0
        %791 = vmatprep.mubr.f32.mxu0 0.0
        %792 = vmatmul.mubr.f32.gmra.mrb[0].mxu0 %v672
        %v793 = vpop.f32.mrb[0].mxu0
        %v794 = vadd.f32 %v656, %v793
        %v795 = vpop.f32.mrb[0].mxu0
        %796 = vmatprep.mubr.f32.mxu0 0.0
        %797 = vmatmul.mubr.f32.gmra.mrb[0].mxu0 %v675
        %v798 = vpop.f32.mrb[0].mxu0
        %v799 = vadd.f32 %v656, %v798
        %v800 = vpop.f32.mrb[0].mxu0
        %801 = vmatprep.mubr.f32.mxu0 0.0
        %802 = vmatmul.mubr.f32.gmra.mrb[0].mxu0 %v678
        %v803 = vpop.f32.mrb[0].mxu0
        %v804 = vadd.f32 %v656, %v803
        %v805 = vpop.f32.mrb[0].mxu0
        %806 = vmatprep.mubr.f32.mxu0 0.0
        %807 = vmatmul.mubr.f32.gmra.mrb[0].mxu0 %v681
        %v808 = vpop.f32.mrb[0].mxu0
        %v809 = vadd.f32 %v656, %v808
        %v810 = vpop.f32.mrb[0].mxu0
        %811 = vmatprep.mubr.f32.mxu0 0.0
        %812 = vmatmul.mubr.f32.gmra.mrb[0].mxu0 %v684
        %v813 = vpop.f32.mrb[0].mxu0
        %v814 = vadd.f32 %v656, %v813
        %v815 = vpop.f32.mrb[0].mxu0
        %816 = vmatprep.mubr.f32.mxu0 0.0
        %817 = vmatmul.mubr.f32.gmra.mrb[0].mxu0 %v687
        %v818 = vpop.f32.mrb[0].mxu0
        %v819 = vadd.f32 %v656, %v818
        %v820 = vpop.f32.mrb[0].mxu0
        %821 = vmatprep.mubr.f32.mxu0 0.0
        %822 = vmatmul.mubr.f32.gmra.mrb[0].mxu0 %v690
        %v823 = vpop.f32.mrb[0].mxu0
        %v824 = vadd.f32 %v656, %v823
        %v825 = vpop.f32.mrb[0].mxu0
        %826 = vmatprep.mubr.f32.mxu0 0.0
        %827 = vmatmul.mubr.f32.gmra.mrb[0].mxu0 %v693
        %v828 = vpop.f32.mrb[0].mxu0
        %v829 = vadd.f32 %v656, %v828
        %v830 = vpop.f32.mrb[0].mxu0
        %831 = vmatprep.mubr.f32.mxu0 0.0
        %832 = vmatmul.mubr.f32.gmra.mrb[0].mxu0 %v696
        %v833 = vpop.f32.mrb[0].mxu0
        %v834 = vadd.f32 %v656, %v833
        %v835 = vpop.f32.mrb[0].mxu0
        %836 = vmatprep.mubr.f32.mxu0 0.0
        %837 = vmatmul.mubr.f32.gmra.mrb[0].mxu0 %v699
        %v838 = vpop.f32.mrb[0].mxu0
        %v839 = vadd.f32 %v656, %v838
        %v840 = vpop.f32.mrb[0].mxu0
        %841 = vmatprep.mubr.f32.mxu0 0.0
        %842 = vmatmul.mubr.f32.gmra.mrb[0].mxu0 %v702
        %v843 = vpop.f32.mrb[0].mxu0
        %v844 = vadd.f32 %v656, %v843
        %v845 = vpop.f32.mrb[0].mxu0
        %846 = vmatprep.mubr.f32.mxu0 0.0
        %847 = vmatmul.mubr.f32.gmra.mrb[0].mxu0 %v705
        %v848 = vpop.f32.mrb[0].mxu0
        %v849 = vadd.f32 %v656, %v848
        %v850 = vpop.f32.mrb[0].mxu0
        %851 = vdwg.mxu0
        %v852 = vmin.f32 %v774, 0.0
        %v853 = vmin.f32 %v779, 0.0
        %v854 = vmin.f32 %v784, 0.0
        %v855 = vmin.f32 %v789, 0.0
        %v856 = vmin.f32 %v794, 0.0
        %v857 = vmin.f32 %v799, 0.0
        %v858 = vmin.f32 %v804, 0.0
        %v859 = vmin.f32 %v809, 0.0
        %v860 = vmin.f32 %v814, 0.0
        %v861 = vmin.f32 %v819, 0.0
        %v862 = vmin.f32 %v824, 0.0
        %v863 = vmin.f32 %v829, 0.0
        %v864 = vmin.f32 %v834, 0.0
        %v865 = vmin.f32 %v839, 0.0
        %v866 = vmin.f32 %v844, 0.0
        %v867 = vmin.f32 %v849, 0.0
        %v868 = vmul.f32 %v852, 1.442695
        %v869 = vpow.pop %v868
        %v870 = vmul.f32 %v853, 1.442695
        %v871 = vpow.pop %v870
        %v872 = vmul.f32 %v854, 1.442695
        %v873 = vpow.pop %v872
        %v874 = vmul.f32 %v855, 1.442695
        %v875 = vpow.pop %v874
        %v876 = vmul.f32 %v856, 1.442695
        %v877 = vpow.pop %v876
        %v878 = vmul.f32 %v857, 1.442695
        %v879 = vpow.pop %v878
        %v880 = vmul.f32 %v858, 1.442695
        %v881 = vpow.pop %v880
        %v882 = vmul.f32 %v859, 1.442695
        %v883 = vpow.pop %v882
        %v884 = vmul.f32 %v860, 1.442695
        %v885 = vpow.pop %v884
        %v886 = vmul.f32 %v861, 1.442695
        %v887 = vpow.pop %v886
        %v888 = vmul.f32 %v862, 1.442695
        %v889 = vpow.pop %v888
        %v890 = vmul.f32 %v863, 1.442695
        %v891 = vpow.pop %v890
        %v892 = vmul.f32 %v864, 1.442695
        %v893 = vpow.pop %v892
        %v894 = vmul.f32 %v865, 1.442695
        %v895 = vpow.pop %v894
        %v896 = vmul.f32 %v866, 1.442695
        %v897 = vpow.pop %v896
        %v898 = vmul.f32 %v867, 1.442695
        %v899 = vpow.pop %v898
        %v900 = vsub.f32 %v869, 1.0
        %v901 = vsub.f32 %v871, 1.0
        %v902 = vsub.f32 %v873, 1.0
        %v903 = vsub.f32 %v875, 1.0
        %v904 = vsub.f32 %v877, 1.0
        %v905 = vsub.f32 %v879, 1.0
        %v906 = vsub.f32 %v881, 1.0
        %v907 = vsub.f32 %v883, 1.0
        %v908 = vsub.f32 %v885, 1.0
        %v909 = vsub.f32 %v887, 1.0
        %v910 = vsub.f32 %v889, 1.0
        %v911 = vsub.f32 %v891, 1.0
        %v912 = vsub.f32 %v893, 1.0
        %v913 = vsub.f32 %v895, 1.0
        %v914 = vsub.f32 %v897, 1.0
        %v915 = vsub.f32 %v899, 1.0
        %v916 = vmul.f32 %v900, 1.6732632
        %v917 = vmul.f32 %v901, 1.6732632
        %v918 = vmul.f32 %v902, 1.6732632
        %v919 = vmul.f32 %v903, 1.6732632
        %v920 = vmul.f32 %v904, 1.6732632
        %v921 = vmul.f32 %v905, 1.6732632
        %v922 = vmul.f32 %v906, 1.6732632
        %v923 = vmul.f32 %v907, 1.6732632
        %v924 = vmul.f32 %v908, 1.6732632
        %v925 = vmul.f32 %v909, 1.6732632
        %v926 = vmul.f32 %v910, 1.6732632
        %v927 = vmul.f32 %v911, 1.6732632
        %v928 = vmul.f32 %v912, 1.6732632
        %v929 = vmul.f32 %v913, 1.6732632
        %v930 = vmul.f32 %v914, 1.6732632
        %v931 = vmul.f32 %v915, 1.6732632
        %vm932 = vcmp.gt.f32.partialorder %v774, 0.0
        %vm933 = vcmp.gt.f32.partialorder %v779, 0.0
        %vm934 = vcmp.gt.f32.partialorder %v784, 0.0
        %vm935 = vcmp.gt.f32.partialorder %v789, 0.0
        %vm936 = vcmp.gt.f32.partialorder %v794, 0.0
        %vm937 = vcmp.gt.f32.partialorder %v799, 0.0
        %vm938 = vcmp.gt.f32.partialorder %v804, 0.0
        %vm939 = vcmp.gt.f32.partialorder %v809, 0.0
        %vm940 = vcmp.gt.f32.partialorder %v814, 0.0
        %vm941 = vcmp.gt.f32.partialorder %v819, 0.0
        %vm942 = vcmp.gt.f32.partialorder %v824, 0.0
        %vm943 = vcmp.gt.f32.partialorder %v829, 0.0
        %vm944 = vcmp.gt.f32.partialorder %v834, 0.0
        %vm945 = vcmp.gt.f32.partialorder %v839, 0.0
        %vm946 = vcmp.gt.f32.partialorder %v844, 0.0
        %vm947 = vcmp.gt.f32.partialorder %v849, 0.0
        %v948 = vsel %vm932, %v774, %v916
        %v949 = vsel %vm933, %v779, %v917
        %v950 = vsel %vm934, %v784, %v918
        %v951 = vsel %vm935, %v789, %v919
        %v952 = vsel %vm936, %v794, %v920
        %v953 = vsel %vm937, %v799, %v921
        %v954 = vsel %vm938, %v804, %v922
        %v955 = vsel %vm939, %v809, %v923
        %v956 = vsel %vm940, %v814, %v924
        %v957 = vsel %vm941, %v819, %v925
        %v958 = vsel %vm942, %v824, %v926
        %v959 = vsel %vm943, %v829, %v927
        %v960 = vsel %vm944, %v834, %v928
        %v961 = vsel %vm945, %v839, %v929
        %v962 = vsel %vm946, %v844, %v930
        %v963 = vsel %vm947, %v849, %v931
        %v964 = vmul.f32 %v948, 1.050701
        %v965 = vmul.f32 %v949, 1.050701
        %v966 = vmul.f32 %v950, 1.050701
        %v967 = vmul.f32 %v951, 1.050701
        %v968 = vmul.f32 %v952, 1.050701
        %v969 = vmul.f32 %v953, 1.050701
        %v970 = vmul.f32 %v954, 1.050701
        %v971 = vmul.f32 %v955, 1.050701
        %v972 = vmul.f32 %v956, 1.050701
        %v973 = vmul.f32 %v957, 1.050701
        %v974 = vmul.f32 %v958, 1.050701
        %v975 = vmul.f32 %v959, 1.050701
        %v976 = vmul.f32 %v960, 1.050701
        %v977 = vmul.f32 %v961, 1.050701
        %v978 = vmul.f32 %v962, 1.050701
        %v979 = vmul.f32 %v963, 1.050701
        %v980 = vld [vmem:[%s5] sm:$0xff]
        %v981 = vld [vmem:[%s5 + $0x8] sm:$0xff]
        %v982 = vld [vmem:[%s5 + $0x10] sm:$0xff]
        %v983 = vld [vmem:[%s5 + $0x18] sm:$0xff]
        %v984 = vld [vmem:[%s6] sm:$0x1]
        %v986 = vlaneseq
        %v987 = vshrl.u32 %v986, 7
        %v988 = vsub.s32 0, %v987
        %v989 = vrot.slane %v984, %v988
        %v992 = vsel %vm658, %v964, 0
        %v995 = vsel %vm658, %v965, 0
        %v998 = vsel %vm658, %v966, 0
        %v1001 = vsel %vm658, %v967, 0
        %v1004 = vsel %vm658, %v968, 0
        %v1007 = vsel %vm658, %v969, 0
        %v1010 = vsel %vm658, %v970, 0
        %v1013 = vsel %vm658, %v971, 0
        %v1016 = vsel %vm658, %v972, 0
        %v1019 = vsel %vm658, %v973, 0
        %v1022 = vsel %vm658, %v974, 0
        %v1025 = vsel %vm658, %v975, 0
        %v1028 = vsel %vm658, %v976, 0
        %v1031 = vsel %vm658, %v977, 0
        %v1034 = vsel %vm658, %v978, 0
        %v1037 = vsel %vm658, %v979, 0
        %1039 = vmatprep.subr.mxu0 0.0
        %1040 = vmatpush1.msra.mxu0 %v980
        %1041 = vmatprep.subr.mxu0 0.0
        %1042 = vmatpush1.msra.mxu0 %v981
        %1043 = vmatprep.subr.mxu0 0.0
        %1044 = vmatpush1.msra.mxu0 %v982
        %1045 = vmatprep.subr.mxu0 0.0
        %1046 = vmatpush1.msra.mxu0 %v983
        %1047 = vmatprep.subr.mxu0 0.0
        %1048 = vmatpush1.msra.mxu0 0.0
        %1049 = vmatprep.subr.mxu0 0.0
        %1050 = vmatpush1.msra.mxu0 0.0
        %1051 = vmatprep.subr.mxu0 0.0
        %1052 = vmatpush1.msra.mxu0 0.0
        %1053 = vmatprep.subr.mxu0 0.0
        %1054 = vmatpush1.msra.mxu0 0.0
        %1055 = vmatprep.subr.mxu0 0.0
        %1056 = vmatpush1.msra.mxu0 0.0
        %1057 = vmatprep.subr.mxu0 0.0
        %1058 = vmatpush1.msra.mxu0 0.0
        %1059 = vmatprep.subr.mxu0 0.0
        %1060 = vmatpush1.msra.mxu0 0.0
        %1061 = vmatprep.subr.mxu0 0.0
        %1062 = vmatpush1.msra.mxu0 0.0
        %1063 = vmatprep.subr.mxu0 0.0
        %1064 = vmatpush1.msra.mxu0 0.0
        %1065 = vmatprep.subr.mxu0 0.0
        %1066 = vmatpush1.msra.mxu0 0.0
        %1067 = vmatprep.subr.mxu0 0.0
        %1068 = vmatpush1.msra.mxu0 0.0
        %1069 = vmatprep.subr.mxu0 0.0
        %1070 = vmatpush1.msra.mxu0 0.0
        %1071 = vmatprep.subr.mxu0 0.0
        %1072 = vmatpush1.msra.mxu0 0.0
        %1073 = vmatprep.subr.mxu0 0.0
        %1074 = vmatpush1.msra.mxu0 0.0
        %1075 = vmatprep.subr.mxu0 0.0
        %1076 = vmatpush1.msra.mxu0 0.0
        %1077 = vmatprep.subr.mxu0 0.0
        %1078 = vmatpush1.msra.mxu0 0.0
        %1079 = vmatprep.subr.mxu0 0.0
        %1080 = vmatpush1.msra.mxu0 0.0
        %1081 = vmatprep.subr.mxu0 0.0
        %1082 = vmatpush1.msra.mxu0 0.0
        %1083 = vmatprep.subr.mxu0 0.0
        %1084 = vmatpush1.msra.mxu0 0.0
        %1085 = vmatprep.subr.mxu0 0.0
        %1086 = vmatpush1.msra.mxu0 0.0
        %1087 = vmatprep.subr.mxu0 0.0
        %1088 = vmatpush1.msra.mxu0 0.0
        %1089 = vmatprep.subr.mxu0 0.0
        %1090 = vmatpush1.msra.mxu0 0.0
        %1091 = vmatprep.subr.mxu0 0.0
        %1092 = vmatpush1.msra.mxu0 0.0
        %1093 = vmatprep.subr.mxu0 0.0
        %1094 = vmatpush1.msra.mxu0 0.0
        %1095 = vmatprep.subr.mxu0 0.0
        %1096 = vmatpush1.msra.mxu0 0.0
        %1097 = vmatprep.subr.mxu0 0.0
        %1098 = vmatpush1.msra.mxu0 0.0
        %1099 = vmatprep.subr.mxu0 0.0
        %1100 = vmatpush1.msra.mxu0 0.0
        %1101 = vmatprep.subr.mxu0 0.0
        %1102 = vmatpush1.msra.mxu0 0.0
        %1103 = vmatprep.mubr.f32.mxu0 0.0
        %1104 = vmatmul.mubr.f32.gmra.mrb[0].mxu0 %v992
        %v1105 = vpop.f32.mrb[0].mxu0
        %v1106 = vadd.f32 %v989, %v1105
        %v1107 = vpop.f32.mrb[0].mxu0
        %1108 = vmatprep.mubr.f32.mxu0 0.0
        %1109 = vmatmul.mubr.f32.gmra.mrb[0].mxu0 %v995
        %v1110 = vpop.f32.mrb[0].mxu0
        %v1111 = vadd.f32 %v989, %v1110
        %v1112 = vpop.f32.mrb[0].mxu0
        %1113 = vmatprep.mubr.f32.mxu0 0.0
        %1114 = vmatmul.mubr.f32.gmra.mrb[0].mxu0 %v998
        %v1115 = vpop.f32.mrb[0].mxu0
        %v1116 = vadd.f32 %v989, %v1115
        %v1117 = vpop.f32.mrb[0].mxu0
        %1118 = vmatprep.mubr.f32.mxu0 0.0
        %1119 = vmatmul.mubr.f32.gmra.mrb[0].mxu0 %v1001
        %v1120 = vpop.f32.mrb[0].mxu0
        %v1121 = vadd.f32 %v989, %v1120
        %v1122 = vpop.f32.mrb[0].mxu0
        %1123 = vmatprep.mubr.f32.mxu0 0.0
        %1124 = vmatmul.mubr.f32.gmra.mrb[0].mxu0 %v1004
        %v1125 = vpop.f32.mrb[0].mxu0
        %v1126 = vadd.f32 %v989, %v1125
        %v1127 = vpop.f32.mrb[0].mxu0
        %1128 = vmatprep.mubr.f32.mxu0 0.0
        %1129 = vmatmul.mubr.f32.gmra.mrb[0].mxu0 %v1007
        %v1130 = vpop.f32.mrb[0].mxu0
        %v1131 = vadd.f32 %v989, %v1130
        %v1132 = vpop.f32.mrb[0].mxu0
        %1133 = vmatprep.mubr.f32.mxu0 0.0
        %1134 = vmatmul.mubr.f32.gmra.mrb[0].mxu0 %v1010
        %v1135 = vpop.f32.mrb[0].mxu0
        %v1136 = vadd.f32 %v989, %v1135
        %v1137 = vpop.f32.mrb[0].mxu0
        %1138 = vmatprep.mubr.f32.mxu0 0.0
        %1139 = vmatmul.mubr.f32.gmra.mrb[0].mxu0 %v1013
        %v1140 = vpop.f32.mrb[0].mxu0
        %v1141 = vadd.f32 %v989, %v1140
        %v1142 = vpop.f32.mrb[0].mxu0
        %1143 = vmatprep.mubr.f32.mxu0 0.0
        %1144 = vmatmul.mubr.f32.gmra.mrb[0].mxu0 %v1016
        %v1145 = vpop.f32.mrb[0].mxu0
        %v1146 = vadd.f32 %v989, %v1145
        %v1147 = vpop.f32.mrb[0].mxu0
        %1148 = vmatprep.mubr.f32.mxu0 0.0
        %1149 = vmatmul.mubr.f32.gmra.mrb[0].mxu0 %v1019
        %v1150 = vpop.f32.mrb[0].mxu0
        %v1151 = vadd.f32 %v989, %v1150
        %v1152 = vpop.f32.mrb[0].mxu0
        %1153 = vmatprep.mubr.f32.mxu0 0.0
        %1154 = vmatmul.mubr.f32.gmra.mrb[0].mxu0 %v1022
        %v1155 = vpop.f32.mrb[0].mxu0
        %v1156 = vadd.f32 %v989, %v1155
        %v1157 = vpop.f32.mrb[0].mxu0
        %1158 = vmatprep.mubr.f32.mxu0 0.0
        %1159 = vmatmul.mubr.f32.gmra.mrb[0].mxu0 %v1025
        %v1160 = vpop.f32.mrb[0].mxu0
        %v1161 = vadd.f32 %v989, %v1160
        %v1162 = vpop.f32.mrb[0].mxu0
        %1163 = vmatprep.mubr.f32.mxu0 0.0
        %1164 = vmatmul.mubr.f32.gmra.mrb[0].mxu0 %v1028
        %v1165 = vpop.f32.mrb[0].mxu0
        %v1166 = vadd.f32 %v989, %v1165
        %v1167 = vpop.f32.mrb[0].mxu0
        %1168 = vmatprep.mubr.f32.mxu0 0.0
        %1169 = vmatmul.mubr.f32.gmra.mrb[0].mxu0 %v1031
        %v1170 = vpop.f32.mrb[0].mxu0
        %v1171 = vadd.f32 %v989, %v1170
        %v1172 = vpop.f32.mrb[0].mxu0
        %1173 = vmatprep.mubr.f32.mxu0 0.0
        %1174 = vmatmul.mubr.f32.gmra.mrb[0].mxu0 %v1034
        %v1175 = vpop.f32.mrb[0].mxu0
        %v1176 = vadd.f32 %v989, %v1175
        %v1177 = vpop.f32.mrb[0].mxu0
        %1178 = vmatprep.mubr.f32.mxu0 0.0
        %1179 = vmatmul.mubr.f32.gmra.mrb[0].mxu0 %v1037
        %v1180 = vpop.f32.mrb[0].mxu0
        %v1181 = vadd.f32 %v989, %v1180
        %v1182 = vpop.f32.mrb[0].mxu0
        %1183 = vdwg.mxu0
        %v1184 = vmin.f32 %v1106, 0.0
        %v1185 = vmin.f32 %v1111, 0.0
        %v1186 = vmin.f32 %v1116, 0.0
        %v1187 = vmin.f32 %v1121, 0.0
        %v1188 = vmin.f32 %v1126, 0.0
        %v1189 = vmin.f32 %v1131, 0.0
        %v1190 = vmin.f32 %v1136, 0.0
        %v1191 = vmin.f32 %v1141, 0.0
        %v1192 = vmin.f32 %v1146, 0.0
        %v1193 = vmin.f32 %v1151, 0.0
        %v1194 = vmin.f32 %v1156, 0.0
        %v1195 = vmin.f32 %v1161, 0.0
        %v1196 = vmin.f32 %v1166, 0.0
        %v1197 = vmin.f32 %v1171, 0.0
        %v1198 = vmin.f32 %v1176, 0.0
        %v1199 = vmin.f32 %v1181, 0.0
        %v1200 = vmul.f32 %v1184, 1.442695
        %v1201 = vpow.pop %v1200
        %v1202 = vmul.f32 %v1185, 1.442695
        %v1203 = vpow.pop %v1202
        %v1204 = vmul.f32 %v1186, 1.442695
        %v1205 = vpow.pop %v1204
        %v1206 = vmul.f32 %v1187, 1.442695
        %v1207 = vpow.pop %v1206
        %v1208 = vmul.f32 %v1188, 1.442695
        %v1209 = vpow.pop %v1208
        %v1210 = vmul.f32 %v1189, 1.442695
        %v1211 = vpow.pop %v1210
        %v1212 = vmul.f32 %v1190, 1.442695
        %v1213 = vpow.pop %v1212
        %v1214 = vmul.f32 %v1191, 1.442695
        %v1215 = vpow.pop %v1214
        %v1216 = vmul.f32 %v1192, 1.442695
        %v1217 = vpow.pop %v1216
        %v1218 = vmul.f32 %v1193, 1.442695
        %v1219 = vpow.pop %v1218
        %v1220 = vmul.f32 %v1194, 1.442695
        %v1221 = vpow.pop %v1220
        %v1222 = vmul.f32 %v1195, 1.442695
        %v1223 = vpow.pop %v1222
        %v1224 = vmul.f32 %v1196, 1.442695
        %v1225 = vpow.pop %v1224
        %v1226 = vmul.f32 %v1197, 1.442695
        %v1227 = vpow.pop %v1226
        %v1228 = vmul.f32 %v1198, 1.442695
        %v1229 = vpow.pop %v1228
        %v1230 = vmul.f32 %v1199, 1.442695
        %v1231 = vpow.pop %v1230
        %v1232 = vsub.f32 %v1201, 1.0
        %v1233 = vsub.f32 %v1203, 1.0
        %v1234 = vsub.f32 %v1205, 1.0
        %v1235 = vsub.f32 %v1207, 1.0
        %v1236 = vsub.f32 %v1209, 1.0
        %v1237 = vsub.f32 %v1211, 1.0
        %v1238 = vsub.f32 %v1213, 1.0
        %v1239 = vsub.f32 %v1215, 1.0
        %v1240 = vsub.f32 %v1217, 1.0
        %v1241 = vsub.f32 %v1219, 1.0
        %v1242 = vsub.f32 %v1221, 1.0
        %v1243 = vsub.f32 %v1223, 1.0
        %v1244 = vsub.f32 %v1225, 1.0
        %v1245 = vsub.f32 %v1227, 1.0
        %v1246 = vsub.f32 %v1229, 1.0
        %v1247 = vsub.f32 %v1231, 1.0
        %v1248 = vmul.f32 %v1232, 1.6732632
        %v1249 = vmul.f32 %v1233, 1.6732632
        %v1250 = vmul.f32 %v1234, 1.6732632
        %v1251 = vmul.f32 %v1235, 1.6732632
        %v1252 = vmul.f32 %v1236, 1.6732632
        %v1253 = vmul.f32 %v1237, 1.6732632
        %v1254 = vmul.f32 %v1238, 1.6732632
        %v1255 = vmul.f32 %v1239, 1.6732632
        %v1256 = vmul.f32 %v1240, 1.6732632
        %v1257 = vmul.f32 %v1241, 1.6732632
        %v1258 = vmul.f32 %v1242, 1.6732632
        %v1259 = vmul.f32 %v1243, 1.6732632
        %v1260 = vmul.f32 %v1244, 1.6732632
        %v1261 = vmul.f32 %v1245, 1.6732632
        %v1262 = vmul.f32 %v1246, 1.6732632
        %v1263 = vmul.f32 %v1247, 1.6732632
        %vm1264 = vcmp.gt.f32.partialorder %v1106, 0.0
        %vm1265 = vcmp.gt.f32.partialorder %v1111, 0.0
        %vm1266 = vcmp.gt.f32.partialorder %v1116, 0.0
        %vm1267 = vcmp.gt.f32.partialorder %v1121, 0.0
        %vm1268 = vcmp.gt.f32.partialorder %v1126, 0.0
        %vm1269 = vcmp.gt.f32.partialorder %v1131, 0.0
        %vm1270 = vcmp.gt.f32.partialorder %v1136, 0.0
        %vm1271 = vcmp.gt.f32.partialorder %v1141, 0.0
        %vm1272 = vcmp.gt.f32.partialorder %v1146, 0.0
        %vm1273 = vcmp.gt.f32.partialorder %v1151, 0.0
        %vm1274 = vcmp.gt.f32.partialorder %v1156, 0.0
        %vm1275 = vcmp.gt.f32.partialorder %v1161, 0.0
        %vm1276 = vcmp.gt.f32.partialorder %v1166, 0.0
        %vm1277 = vcmp.gt.f32.partialorder %v1171, 0.0
        %vm1278 = vcmp.gt.f32.partialorder %v1176, 0.0
        %vm1279 = vcmp.gt.f32.partialorder %v1181, 0.0
        %v1280 = vsel %vm1264, %v1106, %v1248
        %v1281 = vsel %vm1265, %v1111, %v1249
        %v1282 = vsel %vm1266, %v1116, %v1250
        %v1283 = vsel %vm1267, %v1121, %v1251
        %v1284 = vsel %vm1268, %v1126, %v1252
        %v1285 = vsel %vm1269, %v1131, %v1253
        %v1286 = vsel %vm1270, %v1136, %v1254
        %v1287 = vsel %vm1271, %v1141, %v1255
        %v1288 = vsel %vm1272, %v1146, %v1256
        %v1289 = vsel %vm1273, %v1151, %v1257
        %v1290 = vsel %vm1274, %v1156, %v1258
        %v1291 = vsel %vm1275, %v1161, %v1259
        %v1292 = vsel %vm1276, %v1166, %v1260
        %v1293 = vsel %vm1277, %v1171, %v1261
        %v1294 = vsel %vm1278, %v1176, %v1262
        %v1295 = vsel %vm1279, %v1181, %v1263
        %v1296 = vmul.f32 %v1280, 1.050701
        %v1297 = vmul.f32 %v1281, 1.050701
        %v1298 = vmul.f32 %v1282, 1.050701
        %v1299 = vmul.f32 %v1283, 1.050701
        %v1300 = vmul.f32 %v1284, 1.050701
        %v1301 = vmul.f32 %v1285, 1.050701
        %v1302 = vmul.f32 %v1286, 1.050701
        %v1303 = vmul.f32 %v1287, 1.050701
        %v1304 = vmul.f32 %v1288, 1.050701
        %v1305 = vmul.f32 %v1289, 1.050701
        %v1306 = vmul.f32 %v1290, 1.050701
        %v1307 = vmul.f32 %v1291, 1.050701
        %v1308 = vmul.f32 %v1292, 1.050701
        %v1309 = vmul.f32 %v1293, 1.050701
        %v1310 = vmul.f32 %v1294, 1.050701
        %v1311 = vmul.f32 %v1295, 1.050701
        %1312 = vst.msk [vmem:[%s280] sm:$0xff] %vm325, %v1296
        %1313 = vst.msk [vmem:[%s280 + $0x8] sm:$0xff] %vm325, %v1297
        %1314 = vst.msk [vmem:[%s280 + $0x10] sm:$0xff] %vm325, %v1298
        %1315 = vst.msk [vmem:[%s280 + $0x18] sm:$0xff] %vm325, %v1299
        %1316 = vst.msk [vmem:[%s280 + $0x20] sm:$0xff] %vm325, %v1300
        %1317 = vst.msk [vmem:[%s280 + $0x28] sm:$0xff] %vm325, %v1301
        %1318 = vst.msk [vmem:[%s280 + $0x30] sm:$0xff] %vm325, %v1302
        %1319 = vst.msk [vmem:[%s280 + $0x38] sm:$0xff] %vm325, %v1303
        %1320 = vst.msk [vmem:[%s280 + $0x40] sm:$0xff] %vm325, %v1304
        %1321 = vst.msk [vmem:[%s280 + $0x48] sm:$0xff] %vm325, %v1305
        %1322 = vst.msk [vmem:[%s280 + $0x50] sm:$0xff] %vm325, %v1306
        %1323 = vst.msk [vmem:[%s280 + $0x58] sm:$0xff] %vm325, %v1307
        %1324 = vst.msk [vmem:[%s280 + $0x60] sm:$0xff] %vm325, %v1308
        %1325 = vst.msk [vmem:[%s280 + $0x68] sm:$0xff] %vm325, %v1309
        %1326 = vst.msk [vmem:[%s280 + $0x70] sm:$0xff] %vm325, %v1310
        %1327 = vst.msk [vmem:[%s280 + $0x78] sm:$0xff] %vm325, %v1311
        %s1328 = sand.u32 %s178, 1
        %s1329 = sand.u32 %s178, 1
        %s1330 = smul.addr %s1329, 128
        %s1331 = scalar_lea.vmem [#allocation2], %s1330
        // Predicated region
        $region49: #{tpu_custom_call.1} parent=47 // pred_check
          %p1332 = pneg %p188
        $region50: #{tpu_custom_call.1} parent=47 // pred_check_branch
          %1334 = sbr.rel (%p1332) target = $region52
        $region51: #{tpu_custom_call.1} parent=47 // pred_region
          %s1335 = smul.u32 16, %s18
          %s1336 = ssub.s32 63, %s1335
          %p1337 = scmp.lt.s32.totalorder %s1336, 16
          %s1338 = scalar_select %p1337, %s1336, 16
          %s1339 = smul.u32 128, %s1338
          %p1340 = scmp.ne.s32.totalorder 0, %s1339
          %s1341 = smul.addr %s1335, 8
          %s1342 = scalar_lea.vmem %s7, %s1341
          // Predicated region
          $region53: #{tpu_custom_call.1} parent=51 // pred_check
            %p1343 = pneg %p1340
          $region54: #{tpu_custom_call.1} parent=51 // pred_check_branch
            %1345 = sbr.rel (%p1343) target = $region56
          $region55: #{tpu_custom_call.1} parent=51 // pred_region
            // Predicated region
            $region57: #{tpu_custom_call.1} parent=55 // pred_check
              _
            $region58: #{tpu_custom_call.1} parent=55 // pred_check_branch
              %1347 = sbr.rel (0) target = $region60
            $region59: #{tpu_custom_call.1} parent=55 // pred_region
              // Predicated region
              $region79: #{tpu_custom_call.1} parent=59 // pred_check
                _
              $region80: #{tpu_custom_call.1} parent=59 // pred_check_branch
                %1426 = sbr.rel (0) target = $region82
              $region81: #{tpu_custom_call.1} parent=59 // pred_region
                %s1427 = sshrl.u32 %s1338, 4
                // While loop
                $region83: #{tpu_custom_call.1} parent=81 // loop_pre_header
                  _
                $region84: #{tpu_custom_call.1} parent=81 // loop_header
                  %s1429 = sphi 0, %s1431
                  %p1430 = scmp.ge.s32.totalorder %s1429, %s1427
                  %s1434 = sphi 0, %s1471
                  %s1435 = sphi %s1331, %s1474
                  %s1436 = sphi %s1342, %s1475
                $region85: #{tpu_custom_call.1} parent=81 // loop_header_branch
                  %1433 = sbr.rel (%p1430) target = $region89
                $region86: #{tpu_custom_call.1} parent=81 // loop_body
                  %v1437 = vld [vmem:[%s1435] sm:$0xff]
                  %1438 = vst [vmem:[%s1436] sm:$0xff] %v1437
                  %v1439 = vld [vmem:[%s1435 + $0x8] sm:$0xff]
                  %1440 = vst [vmem:[%s1436 + $0x8] sm:$0xff] %v1439
                  %v1441 = vld [vmem:[%s1435 + $0x10] sm:$0xff]
                  %1442 = vst [vmem:[%s1436 + $0x10] sm:$0xff] %v1441
                  %v1443 = vld [vmem:[%s1435 + $0x18] sm:$0xff]
                  %1444 = vst [vmem:[%s1436 + $0x18] sm:$0xff] %v1443
                  %v1445 = vld [vmem:[%s1435 + $0x20] sm:$0xff]
                  %1446 = vst [vmem:[%s1436 + $0x20] sm:$0xff] %v1445
                  %v1447 = vld [vmem:[%s1435 + $0x28] sm:$0xff]
                  %1448 = vst [vmem:[%s1436 + $0x28] sm:$0xff] %v1447
                  %v1449 = vld [vmem:[%s1435 + $0x30] sm:$0xff]
                  %1450 = vst [vmem:[%s1436 + $0x30] sm:$0xff] %v1449
                  %v1451 = vld [vmem:[%s1435 + $0x38] sm:$0xff]
                  %1452 = vst [vmem:[%s1436 + $0x38] sm:$0xff] %v1451
                  %v1453 = vld [vmem:[%s1435 + $0x40] sm:$0xff]
                  %1454 = vst [vmem:[%s1436 + $0x40] sm:$0xff] %v1453
                  %v1455 = vld [vmem:[%s1435 + $0x48] sm:$0xff]
                  %1456 = vst [vmem:[%s1436 + $0x48] sm:$0xff] %v1455
                  %v1457 = vld [vmem:[%s1435 + $0x50] sm:$0xff]
                  %1458 = vst [vmem:[%s1436 + $0x50] sm:$0xff] %v1457
                  %v1459 = vld [vmem:[%s1435 + $0x58] sm:$0xff]
                  %1460 = vst [vmem:[%s1436 + $0x58] sm:$0xff] %v1459
                  %v1461 = vld [vmem:[%s1435 + $0x60] sm:$0xff]
                  %1462 = vst [vmem:[%s1436 + $0x60] sm:$0xff] %v1461
                  %v1463 = vld [vmem:[%s1435 + $0x68] sm:$0xff]
                  %1464 = vst [vmem:[%s1436 + $0x68] sm:$0xff] %v1463
                  %v1465 = vld [vmem:[%s1435 + $0x70] sm:$0xff]
                  %1466 = vst [vmem:[%s1436 + $0x70] sm:$0xff] %v1465
                  %v1467 = vld [vmem:[%s1435 + $0x78] sm:$0xff]
                  %1468 = vst [vmem:[%s1436 + $0x78] sm:$0xff] %v1467
                  %s1469 = sadd.s32 1, %s1434
                  %p1470 = scmp.ge.s32.totalorder %s1469, %s1427
                  %s1471 = scalar_select %p1470, 0, %s1469
                  %s1472 = smul.u32 %s1471, 128
                  %s1473 = smul.u32 %s1471, 128
                  %s1474 = scalar_lea.vmem %s1331, %s1472 [#allocation2]
                  %s1475 = scalar_lea.vmem %s1342, %s1473
                $region87: #{tpu_custom_call.1} parent=81 // loop_footer
                  %s1431 = sadd.s32 %s1429, 1
                $region88: #{tpu_custom_call.1} parent=81 // loop_footer_branch
                  %1428 = sbr.rel target = $region84
                $region89: #{tpu_custom_call.1} parent=81 // loop_exit
                  _
                %s1476 = sshrl.u32 %s1338, 4
                %s1477 = sand.u32 %s1338, 15
                %s1478 = smul.u32 %s1476, 16
                %s1479 = smul.u32 8, %s1478
                %s1480 = scalar_lea.vmem %s1331, %s1479 [#allocation2]
                %s1481 = smul.u32 8, %s1478
                %s1482 = scalar_lea.vmem %s1342, %s1481
                // While loop
                $region90: #{tpu_custom_call.1} parent=81 // loop_pre_header
                  _
                $region91: #{tpu_custom_call.1} parent=81 // loop_header
                  %s1484 = sphi 0, %s1486
                  %p1485 = scmp.ge.s32.totalorder %s1484, %s1477
                  %s1489 = sphi 0, %s1496
                  %s1490 = sphi %s1480, %s1499
                  %s1491 = sphi %s1482, %s1500
                $region92: #{tpu_custom_call.1} parent=81 // loop_header_branch
                  %1488 = sbr.rel (%p1485) target = $region96
                $region93: #{tpu_custom_call.1} parent=81 // loop_body
                  %v1492 = vld [vmem:[%s1490] sm:$0xff]
                  %1493 = vst [vmem:[%s1491] sm:$0xff] %v1492
                  %s1494 = sadd.s32 1, %s1489
                  %p1495 = scmp.ge.s32.totalorder %s1494, %s1477
                  %s1496 = scalar_select %p1495, 0, %s1494
                  %s1497 = smul.u32 %s1496, 8
                  %s1498 = smul.u32 %s1496, 8
                  %s1499 = scalar_lea.vmem %s1480, %s1497 [#allocation2]
                  %s1500 = scalar_lea.vmem %s1482, %s1498
                $region94: #{tpu_custom_call.1} parent=81 // loop_footer
                  %s1486 = sadd.s32 %s1484, 1
                $region95: #{tpu_custom_call.1} parent=81 // loop_footer_branch
                  %1483 = sbr.rel target = $region91
                $region96: #{tpu_custom_call.1} parent=81 // loop_exit
                  _
              $region82: #{tpu_custom_call.1} parent=59 // pred_fallthru
                _
              // Predicated region
              $region97: #{tpu_custom_call.1} parent=59 // pred_check
                _
              $region98: #{tpu_custom_call.1} parent=59 // pred_check_branch
                %1502 = sbr.rel target = $region100
              $region99: #{tpu_custom_call.1} parent=59 // pred_region
                _
              $region100: #{tpu_custom_call.1} parent=59 // pred_fallthru
                _
            $region60: #{tpu_custom_call.1} parent=55 // pred_fallthru
              _
            // Predicated region
            $region61: #{tpu_custom_call.1} parent=55 // pred_check
              _
            $region62: #{tpu_custom_call.1} parent=55 // pred_check_branch
              %1349 = sbr.rel target = $region64
            $region63: #{tpu_custom_call.1} parent=55 // pred_region
              %s1351 = sshrl.u32 %s1338, 4
              // While loop
              $region65: #{tpu_custom_call.1} parent=63 // loop_pre_header
                _
              $region66: #{tpu_custom_call.1} parent=63 // loop_header
                %s1353 = sphi 0, %s1355
                %p1354 = scmp.ge.s32.totalorder %s1353, %s1351
                %s1358 = sphi 0, %s1395
                %s1359 = sphi %s1331, %s1398
                %s1360 = sphi %s1342, %s1399
              $region67: #{tpu_custom_call.1} parent=63 // loop_header_branch
                %1357 = sbr.rel (%p1354) target = $region71
              $region68: #{tpu_custom_call.1} parent=63 // loop_body
                %v1361 = vld [vmem:[%s1359] sm:$0xff]
                %1362 = vst [vmem:[%s1360] sm:$0xff] %v1361
                %v1363 = vld [vmem:[%s1359 + $0x8] sm:$0xff]
                %1364 = vst [vmem:[%s1360 + $0x8] sm:$0xff] %v1363
                %v1365 = vld [vmem:[%s1359 + $0x10] sm:$0xff]
                %1366 = vst [vmem:[%s1360 + $0x10] sm:$0xff] %v1365
                %v1367 = vld [vmem:[%s1359 + $0x18] sm:$0xff]
                %1368 = vst [vmem:[%s1360 + $0x18] sm:$0xff] %v1367
                %v1369 = vld [vmem:[%s1359 + $0x20] sm:$0xff]
                %1370 = vst [vmem:[%s1360 + $0x20] sm:$0xff] %v1369
                %v1371 = vld [vmem:[%s1359 + $0x28] sm:$0xff]
                %1372 = vst [vmem:[%s1360 + $0x28] sm:$0xff] %v1371
                %v1373 = vld [vmem:[%s1359 + $0x30] sm:$0xff]
                %1374 = vst [vmem:[%s1360 + $0x30] sm:$0xff] %v1373
                %v1375 = vld [vmem:[%s1359 + $0x38] sm:$0xff]
                %1376 = vst [vmem:[%s1360 + $0x38] sm:$0xff] %v1375
                %v1377 = vld [vmem:[%s1359 + $0x40] sm:$0xff]
                %1378 = vst [vmem:[%s1360 + $0x40] sm:$0xff] %v1377
                %v1379 = vld [vmem:[%s1359 + $0x48] sm:$0xff]
                %1380 = vst [vmem:[%s1360 + $0x48] sm:$0xff] %v1379
                %v1381 = vld [vmem:[%s1359 + $0x50] sm:$0xff]
                %1382 = vst [vmem:[%s1360 + $0x50] sm:$0xff] %v1381
                %v1383 = vld [vmem:[%s1359 + $0x58] sm:$0xff]
                %1384 = vst [vmem:[%s1360 + $0x58] sm:$0xff] %v1383
                %v1385 = vld [vmem:[%s1359 + $0x60] sm:$0xff]
                %1386 = vst [vmem:[%s1360 + $0x60] sm:$0xff] %v1385
                %v1387 = vld [vmem:[%s1359 + $0x68] sm:$0xff]
                %1388 = vst [vmem:[%s1360 + $0x68] sm:$0xff] %v1387
                %v1389 = vld [vmem:[%s1359 + $0x70] sm:$0xff]
                %1390 = vst [vmem:[%s1360 + $0x70] sm:$0xff] %v1389
                %v1391 = vld [vmem:[%s1359 + $0x78] sm:$0xff]
                %1392 = vst [vmem:[%s1360 + $0x78] sm:$0xff] %v1391
                %s1393 = sadd.s32 1, %s1358
                %p1394 = scmp.ge.s32.totalorder %s1393, %s1351
                %s1395 = scalar_select %p1394, 0, %s1393
                %s1396 = smul.u32 %s1395, 128
                %s1397 = smul.u32 %s1395, 128
                %s1398 = scalar_lea.vmem %s1331, %s1396 [#allocation2]
                %s1399 = scalar_lea.vmem %s1342, %s1397
              $region69: #{tpu_custom_call.1} parent=63 // loop_footer
                %s1355 = sadd.s32 %s1353, 1
              $region70: #{tpu_custom_call.1} parent=63 // loop_footer_branch
                %1352 = sbr.rel target = $region66
              $region71: #{tpu_custom_call.1} parent=63 // loop_exit
                _
              %s1400 = sshrl.u32 %s1338, 4
              %s1401 = sand.u32 %s1338, 15
              %s1402 = smul.u32 %s1400, 16
              %s1403 = smul.u32 8, %s1402
              %s1404 = scalar_lea.vmem %s1331, %s1403 [#allocation2]
              %s1405 = smul.u32 8, %s1402
              %s1406 = scalar_lea.vmem %s1342, %s1405
              // While loop
              $region72: #{tpu_custom_call.1} parent=63 // loop_pre_header
                _
              $region73: #{tpu_custom_call.1} parent=63 // loop_header
                %s1408 = sphi 0, %s1410
                %p1409 = scmp.ge.s32.totalorder %s1408, %s1401
                %s1413 = sphi 0, %s1420
                %s1414 = sphi %s1404, %s1423
                %s1415 = sphi %s1406, %s1424
              $region74: #{tpu_custom_call.1} parent=63 // loop_header_branch
                %1412 = sbr.rel (%p1409) target = $region78
              $region75: #{tpu_custom_call.1} parent=63 // loop_body
                %v1416 = vld [vmem:[%s1414] sm:$0xff]
                %1417 = vst [vmem:[%s1415] sm:$0xff] %v1416
                %s1418 = sadd.s32 1, %s1413
                %p1419 = scmp.ge.s32.totalorder %s1418, %s1401
                %s1420 = scalar_select %p1419, 0, %s1418
                %s1421 = smul.u32 %s1420, 8
                %s1422 = smul.u32 %s1420, 8
                %s1423 = scalar_lea.vmem %s1404, %s1421 [#allocation2]
                %s1424 = scalar_lea.vmem %s1406, %s1422
              $region76: #{tpu_custom_call.1} parent=63 // loop_footer
                %s1410 = sadd.s32 %s1408, 1
              $region77: #{tpu_custom_call.1} parent=63 // loop_footer_branch
                %1407 = sbr.rel target = $region73
              $region78: #{tpu_custom_call.1} parent=63 // loop_exit
                _
            $region64: #{tpu_custom_call.1} parent=55 // pred_fallthru
              _
          $region56: #{tpu_custom_call.1} parent=51 // pred_fallthru
            _
          %1503 = vnop
        $region52: #{tpu_custom_call.1} parent=47 // pred_fallthru
          _
      $region48: #{tpu_custom_call.1} parent=5 // pred_fallthru
        _
      %p1504 = scmp.le.s32.totalorder 2, %s13
      // Predicated region
      $region101: #{tpu_custom_call.1} parent=5 // pred_check
        %p1505 = pneg %p1504
      $region102: #{tpu_custom_call.1} parent=5 // pred_check_branch
        %1507 = sbr.rel (%p1505) target = $region104
      $region103: #{tpu_custom_call.1} parent=5 // pred_region
        %s1508 = ssub.s32 %s13, 2
        // Predicated region
        $region105: #{tpu_custom_call.1} parent=103 // pred_check
          %p1509 = pneg %p194
        $region106: #{tpu_custom_call.1} parent=103 // pred_check_branch
          %1511 = sbr.rel (%p1509) target = $region108
        $region107: #{tpu_custom_call.1} parent=103 // pred_region
          %s1512 = sand.u32 %s179, 1
          %s1513 = sand.u32 %s179, 1
          %s1514 = smul.addr %s1513, 128
          %s1515 = scalar_lea.vmem [#allocation2], %s1514
        $region108: #{tpu_custom_call.1} parent=103 // pred_fallthru
          _
      $region104: #{tpu_custom_call.1} parent=5 // pred_fallthru
        _
    $region6: #{tpu_custom_call.1} parent=1 // loop_footer
      %s17 = sadd.s32 1, %s13
    $region7: #{tpu_custom_call.1} parent=1 // loop_footer_branch
      %12 = sbr.rel target = $region3
    $region8: #{tpu_custom_call.1} parent=1 // loop_exit
      _

</llo_original>
